<compile_context>
chip_gen: v5e
topology: v5e:2x2
jax: 0.10.0
libtpu: 0.0.40
codegen_flags: <defaults>
</compile_context>

<pallas_src>
import functools

import jax
import jax.numpy as jnp
from jax import lax
from jax.experimental import pallas as pl
from jax.experimental.pallas import tpu as pltpu

HIDDEN = 64   # self.hidden_size = 64
OUT = 64      # self.out_size = 64


# --------------------------- fused DSSM kernel ------------------------------
def _make_fused_kernel(B, Lq, Ld, H):
    G = 4 * H

    def gates(pre, c_prev):
        # One sigmoid over the full (B, 4H) row (single EUP pass), tanh only on g.
        s = jax.nn.sigmoid(pre)
        i = s[:, 0:H]
        f = s[:, H:2 * H]
        o = s[:, 3 * H:4 * H]
        g = jnp.tanh(pre[:, 2 * H:3 * H])
        c = i * g if c_prev is None else f * c_prev + i * g
        h = o * jnp.tanh(c)
        return h, c

    def tower(x_ref, w_ref, b_ref, whh_ref, L):
        # Single big input projection for BOTH directions, off the serial path:
        #   (L*B, E) @ (E, 8H) ; columns [0:4H] = forward gates, [4H:8H] = backward.
        proj = (jnp.dot(x_ref[...], w_ref[...],
                        preferred_element_type=jnp.float32) + b_ref[...])
        # Forward direction: the model only reads output[t=0]; zero initial
        # state means the recurrent term vanishes -> one gate evaluation.
        h_f, _ = gates(proj[0:B, 0:G], None)
        # Backward direction: reversed-time recurrence. First reversed step
        # (t = L-1) also starts from zero state -> skip its h@Whh matmul.
        h_b, c_b = gates(proj[(L - 1) * B:L * B, G:2 * G], None)
        whh = whh_ref[...]
        for t in range(L - 2, -1, -1):   # fully unrolled: static slices
            pre = proj[t * B:(t + 1) * B, G:2 * G] + jnp.dot(
                h_b, whh, preferred_element_type=jnp.float32)
            h_b, c_b = gates(pre, c_b)
        # PyTorch bidirectional output layout at t=0: [forward | backward]
        return jnp.concatenate([h_f, h_b], axis=1)   # (B, 2H)

    def kernel(qx_ref, dx_ref,
               qw_ref, qb_ref, qwhh_ref,
               dw_ref, db_ref, dwhh_ref,
               qlw_ref, qlb_ref, dlw_ref, dlb_ref,
               sims_ref):
        q_feat = tower(qx_ref, qw_ref, qb_ref, qwhh_ref, Lq)
        d_feat = tower(dx_ref, dw_ref, db_ref, dwhh_ref, Ld)

        # Projection head: Linear(2H -> OUT) + tanh, per tower.
        q_rep = jnp.tanh(jnp.dot(q_feat, qlw_ref[...],
                                 preferred_element_type=jnp.float32) + qlb_ref[...])
        d_rep = jnp.tanh(jnp.dot(d_feat, dlw_ref[...],
                                 preferred_element_type=jnp.float32) + dlb_ref[...])

        # F.normalize(p=2, dim=1) semantics: x / max(||x||_2, 1e-12), then row dot.
        qn = jnp.sqrt(jnp.sum(q_rep * q_rep, axis=1, keepdims=True))
        dn = jnp.sqrt(jnp.sum(d_rep * d_rep, axis=1, keepdims=True))
        q_hat = q_rep / jnp.maximum(qn, 1e-12)
        d_hat = d_rep / jnp.maximum(dn, 1e-12)
        sims_ref[...] = jnp.sum(q_hat * d_hat, axis=1, keepdims=True)

    return kernel


def _full_spec(shape):
    zeros = (0,) * len(shape)
    return pl.BlockSpec(shape, lambda i: zeros)


# ------------------------------- forward ------------------------------------
def lstm_dssm_forward(kparams, qs, ds):
    # Embedding lookup kept as plain-JAX glue (data-dependent gather).
    # TODO(synk): for huge vocabs this could become a manual-DMA gather kernel.
    qs_emb = kparams["q_embed"][qs]            # (B, Lq, E)
    ds_emb = kparams["d_embed"][ds]            # (B, Ld, E)
    # nn.Dropout(0.4) is identity at inference; args.vat perturbation path skipped.

    B, Lq, E = qs_emb.shape
    Ld = ds_emb.shape[1]
    H = HIDDEN

    # Time-major flatten (row = t*B + b) so the kernel slices timesteps off a
    # 2-D VMEM block with static sublane ranges (no in-kernel 3-D reshapes).
    qx2 = jnp.transpose(qs_emb, (1, 0, 2)).reshape(Lq * B, E)
    dx2 = jnp.transpose(ds_emb, (1, 0, 2)).reshape(Ld * B, E)

    kernel = _make_fused_kernel(B, Lq, Ld, H)
    sims = pl.pallas_call(
        kernel,
        out_shape=jax.ShapeDtypeStruct((B, 1), jnp.float32),
        grid=(1,),
        in_specs=[
            _full_spec((Lq * B, E)), _full_spec((Ld * B, E)),
            _full_spec((E, 8 * H)), _full_spec((1, 8 * H)), _full_spec((H, 4 * H)),
            _full_spec((E, 8 * H)), _full_spec((1, 8 * H)), _full_spec((H, 4 * H)),
            _full_spec((2 * H, OUT)), _full_spec((1, OUT)),
            _full_spec((2 * H, OUT)), _full_spec((1, OUT)),
        ],
        out_specs=_full_spec((B, 1)),
        compiler_params=pltpu.CompilerParams(dimension_semantics=("arbitrary",)),
    )(qx2, dx2,
      kparams["q_w"], kparams["q_b"], kparams["q_whh"],
      kparams["d_w"], kparams["d_b"], kparams["d_whh"],
      kparams["q_lin_w"], kparams["q_lin_b"],
      kparams["d_lin_w"], kparams["d_lin_b"])
    return sims[:, 0]


# --------------------------- parameter handling ------------------------------
def init_params(key, q_vocab, d_vocab, embed_dim):
    """Raw parameters in PyTorch layout (w_ih: (4H,E), w_hh: (4H,H), gate order i,f,g,o)."""
    H = HIDDEN
    keys = list(jax.random.split(key, 24))
    it = iter(keys)

    def nrm(shape, scale=0.1):
        return scale * jax.random.normal(next(it), shape, dtype=jnp.float32)

    def lstm_params():
        return dict(
            w_ih_f=nrm((4 * H, embed_dim)), w_hh_f=nrm((4 * H, H)),
            b_ih_f=nrm((4 * H,)), b_hh_f=nrm((4 * H,)),
            w_ih_b=nrm((4 * H, embed_dim)), w_hh_b=nrm((4 * H, H)),
            b_ih_b=nrm((4 * H,)), b_hh_b=nrm((4 * H,)),
        )

    return dict(
        q_embed=nrm((q_vocab, embed_dim), 1.0),
        d_embed=nrm((d_vocab, embed_dim), 1.0),
        q_lstm=lstm_params(),
        d_lstm=lstm_params(),
        q_lin_w=nrm((OUT, 2 * H)), q_lin_b=nrm((OUT,)),
        d_lin_w=nrm((OUT, 2 * H)), d_lin_b=nrm((OUT,)),
    )


def prepare_params(raw):
    """One-time repack of PyTorch-layout weights into the kernel layout:
    transposed wih for fwd|bwd concatenated to (E, 8H), biases pre-folded
    (b_ih + b_hh), backward w_hh transposed to (H, 4H).  The forward-direction
    w_hh is never needed (only output[t=0] is consumed)."""
    H = HIDDEN

    def pack_lstm(p):
        w = jnp.concatenate([jnp.transpose(p["w_ih_f"]),
                             jnp.transpose(p["w_ih_b"])], axis=1)        # (E, 8H)
        b = jnp.concatenate([p["b_ih_f"] + p["b_hh_f"],
                             p["b_ih_b"] + p["b_hh_b"]]).reshape(1, 8 * H)
        whh = jnp.transpose(p["w_hh_b"])                                  # (H, 4H)
        return w, b, whh

    qw, qb, qwhh = pack_lstm(raw["q_lstm"])
    dw, db, dwhh = pack_lstm(raw["d_lstm"])
    return dict(
        q_embed=raw["q_embed"], d_embed=raw["d_embed"],
        q_w=qw, q_b=qb, q_whh=qwhh,
        d_w=dw, d_b=db, d_whh=dwhh,
        q_lin_w=jnp.transpose(raw["q_lin_w"]), q_lin_b=raw["q_lin_b"].reshape(1, OUT),
        d_lin_w=jnp.transpose(raw["d_lin_w"]), d_lin_b=raw["d_lin_b"].reshape(1, OUT),
    )


if __name__ == "__main__":
    key = jax.random.PRNGKey(0)
    kp, kq, kd = jax.random.split(key, 3)

    B, Lq, Ld, E = 2, 8, 8, 32
    q_vocab, d_vocab = 50, 60

    raw_params = init_params(kp, q_vocab, d_vocab, E)
    kparams = prepare_params(raw_params)          # pre-transpose / fold once

    qs = jax.random.randint(kq, (B, Lq), 0, q_vocab, dtype=jnp.int32)
    ds = jax.random.randint(kd, (B, Ld), 0, d_vocab, dtype=jnp.int32)

    fwd = jax.jit(functools.partial(lstm_dssm_forward, kparams))
    sims = jax.block_until_ready(fwd(qs, ds))
    assert sims.shape == (B,) and sims.dtype == jnp.float32
    assert bool(jnp.all(jnp.isfinite(sims)))
    print("KERNEL_OK")
</pallas_src>

<mosaic_0001>
module attributes {stable_mosaic.version = 11 : i64} {
  func.func @kernel(%arg0: i32, %arg1: memref<16x32xf32, #tpu.memory_space<vmem>>, %arg2: memref<16x32xf32, #tpu.memory_space<vmem>>, %arg3: memref<32x512xf32, #tpu.memory_space<vmem>>, %arg4: memref<1x512xf32, #tpu.memory_space<vmem>>, %arg5: memref<64x256xf32, #tpu.memory_space<vmem>>, %arg6: memref<32x512xf32, #tpu.memory_space<vmem>>, %arg7: memref<1x512xf32, #tpu.memory_space<vmem>>, %arg8: memref<64x256xf32, #tpu.memory_space<vmem>>, %arg9: memref<128x64xf32, #tpu.memory_space<vmem>>, %arg10: memref<1x64xf32, #tpu.memory_space<vmem>>, %arg11: memref<128x64xf32, #tpu.memory_space<vmem>>, %arg12: memref<1x64xf32, #tpu.memory_space<vmem>>, %arg13: memref<2x1xf32, #tpu.memory_space<vmem>>) attributes {dimension_semantics = [#tpu.dimension_semantics<arbitrary>], iteration_bounds = array<i64: 1>, scalar_prefetch = 0 : i64, scratch_operands = 0 : i64, tpu.core_type = #tpu.core_type<tc>, window_params = [{pipeline_mode = #tpu.pipeline_mode<synchronous>, transform_indices = @transform_0, window_bounds = array<i64: 16, 32>}, {pipeline_mode = #tpu.pipeline_mode<synchronous>, transform_indices = @transform_1, window_bounds = array<i64: 16, 32>}, {pipeline_mode = #tpu.pipeline_mode<synchronous>, transform_indices = @transform_2, window_bounds = array<i64: 32, 512>}, {pipeline_mode = #tpu.pipeline_mode<synchronous>, transform_indices = @transform_3, window_bounds = array<i64: 1, 512>}, {pipeline_mode = #tpu.pipeline_mode<synchronous>, transform_indices = @transform_4, window_bounds = array<i64: 64, 256>}, {pipeline_mode = #tpu.pipeline_mode<synchronous>, transform_indices = @transform_5, window_bounds = array<i64: 32, 512>}, {pipeline_mode = #tpu.pipeline_mode<synchronous>, transform_indices = @transform_6, window_bounds = array<i64: 1, 512>}, {pipeline_mode = #tpu.pipeline_mode<synchronous>, transform_indices = @transform_7, window_bounds = array<i64: 64, 256>}, {pipeline_mode = #tpu.pipeline_mode<synchronous>, transform_indices = @transform_8, window_bounds = array<i64: 128, 64>}, {pipeline_mode = #tpu.pipeline_mode<synchronous>, transform_indices = @transform_9, window_bounds = array<i64: 1, 64>}, {pipeline_mode = #tpu.pipeline_mode<synchronous>, transform_indices = @transform_10, window_bounds = array<i64: 128, 64>}, {pipeline_mode = #tpu.pipeline_mode<synchronous>, transform_indices = @transform_11, window_bounds = array<i64: 1, 64>}, {pipeline_mode = #tpu.pipeline_mode<synchronous>, transform_indices = @transform_12, window_bounds = array<i64: 2, 1>}]} {
    %c0 = arith.constant 0 : index
    %c0_0 = arith.constant 0 : index
    %0 = vector.load %arg1[%c0, %c0_0] : memref<16x32xf32, #tpu.memory_space<vmem>>, vector<16x32xf32>
    %c0_1 = arith.constant 0 : index
    %c0_2 = arith.constant 0 : index
    %1 = vector.load %arg3[%c0_1, %c0_2] : memref<32x512xf32, #tpu.memory_space<vmem>>, vector<32x512xf32>
    %cst = arith.constant dense<0.000000e+00> : vector<16x512xf32>
    %2 = tpu.matmul %0, %1, %cst {dimension_numbers = #tpu.dot_dimension_numbers<[1], [0], [0], [1], [0, 0, 1, 1], [], []>} : vector<16x32xf32>, vector<32x512xf32>, vector<16x512xf32> -> vector<16x512xf32>
    %c0_3 = arith.constant 0 : index
    %c0_4 = arith.constant 0 : index
    %3 = vector.load %arg4[%c0_3, %c0_4] : memref<1x512xf32, #tpu.memory_space<vmem>>, vector<1x512xf32>
    %4 = vector.broadcast %3 : vector<1x512xf32> to vector<16x512xf32>
    %5 = arith.addf %2, %4 : vector<16x512xf32>
    %6 = vector.extract_strided_slice %5 {offsets = [0, 0], sizes = [2, 256], strides = [1, 1]} : vector<16x512xf32> to vector<2x256xf32>
    %7 = arith.negf %6 : vector<2x256xf32>
    %8 = math.exp %7 : vector<2x256xf32>
    %cst_5 = arith.constant 1.000000e+00 : f32
    %9 = vector.broadcast %cst_5 : f32 to vector<2x256xf32>
    %10 = arith.addf %9, %8 : vector<2x256xf32>
    %11 = arith.divf %9, %10 : vector<2x256xf32>
    %12 = vector.extract_strided_slice %11 {offsets = [0, 0], sizes = [2, 64], strides = [1, 1]} : vector<2x256xf32> to vector<2x64xf32>
    %13 = vector.extract_strided_slice %11 {offsets = [0, 192], sizes = [2, 64], strides = [1, 1]} : vector<2x256xf32> to vector<2x64xf32>
    %14 = vector.extract_strided_slice %6 {offsets = [0, 128], sizes = [2, 64], strides = [1, 1]} : vector<2x256xf32> to vector<2x64xf32>
    %15 = math.tanh %14 : vector<2x64xf32>
    %16 = arith.mulf %12, %15 : vector<2x64xf32>
    %17 = math.tanh %16 : vector<2x64xf32>
    %18 = arith.mulf %13, %17 : vector<2x64xf32>
    %19 = vector.extract_strided_slice %5 {offsets = [14, 256], sizes = [2, 256], strides = [1, 1]} : vector<16x512xf32> to vector<2x256xf32>
    %20 = arith.negf %19 : vector<2x256xf32>
    %21 = math.exp %20 : vector<2x256xf32>
    %cst_6 = arith.constant 1.000000e+00 : f32
    %22 = vector.broadcast %cst_6 : f32 to vector<2x256xf32>
    %23 = arith.addf %22, %21 : vector<2x256xf32>
    %24 = arith.divf %22, %23 : vector<2x256xf32>
    %25 = vector.extract_strided_slice %24 {offsets = [0, 0], sizes = [2, 64], strides = [1, 1]} : vector<2x256xf32> to vector<2x64xf32>
    %26 = vector.extract_strided_slice %24 {offsets = [0, 192], sizes = [2, 64], strides = [1, 1]} : vector<2x256xf32> to vector<2x64xf32>
    %27 = vector.extract_strided_slice %19 {offsets = [0, 128], sizes = [2, 64], strides = [1, 1]} : vector<2x256xf32> to vector<2x64xf32>
    %28 = math.tanh %27 : vector<2x64xf32>
    %29 = arith.mulf %25, %28 : vector<2x64xf32>
    %30 = math.tanh %29 : vector<2x64xf32>
    %31 = arith.mulf %26, %30 : vector<2x64xf32>
    %c0_7 = arith.constant 0 : index
    %c0_8 = arith.constant 0 : index
    %32 = vector.load %arg5[%c0_7, %c0_8] : memref<64x256xf32, #tpu.memory_space<vmem>>, vector<64x256xf32>
    %33 = vector.extract_strided_slice %5 {offsets = [12, 256], sizes = [2, 256], strides = [1, 1]} : vector<16x512xf32> to vector<2x256xf32>
    %cst_9 = arith.constant dense<0.000000e+00> : vector<2x256xf32>
    %34 = tpu.matmul %31, %32, %cst_9 {dimension_numbers = #tpu.dot_dimension_numbers<[1], [0], [0], [1], [0, 0, 1, 1], [], []>} : vector<2x64xf32>, vector<64x256xf32>, vector<2x256xf32> -> vector<2x256xf32>
    %35 = arith.addf %33, %34 : vector<2x256xf32>
    %36 = arith.negf %35 : vector<2x256xf32>
    %37 = math.exp %36 : vector<2x256xf32>
    %cst_10 = arith.constant 1.000000e+00 : f32
    %38 = vector.broadcast %cst_10 : f32 to vector<2x256xf32>
    %39 = arith.addf %38, %37 : vector<2x256xf32>
    %40 = arith.divf %38, %39 : vector<2x256xf32>
    %41 = vector.extract_strided_slice %40 {offsets = [0, 0], sizes = [2, 64], strides = [1, 1]} : vector<2x256xf32> to vector<2x64xf32>
    %42 = vector.extract_strided_slice %40 {offsets = [0, 64], sizes = [2, 64], strides = [1, 1]} : vector<2x256xf32> to vector<2x64xf32>
    %43 = vector.extract_strided_slice %40 {offsets = [0, 192], sizes = [2, 64], strides = [1, 1]} : vector<2x256xf32> to vector<2x64xf32>
    %44 = vector.extract_strided_slice %35 {offsets = [0, 128], sizes = [2, 64], strides = [1, 1]} : vector<2x256xf32> to vector<2x64xf32>
    %45 = math.tanh %44 : vector<2x64xf32>
    %46 = arith.mulf %42, %29 : vector<2x64xf32>
    %47 = arith.mulf %41, %45 : vector<2x64xf32>
    %48 = arith.addf %46, %47 : vector<2x64xf32>
    %49 = math.tanh %48 : vector<2x64xf32>
    %50 = arith.mulf %43, %49 : vector<2x64xf32>
    %51 = vector.extract_strided_slice %5 {offsets = [10, 256], sizes = [2, 256], strides = [1, 1]} : vector<16x512xf32> to vector<2x256xf32>
    %cst_11 = arith.constant dense<0.000000e+00> : vector<2x256xf32>
    %52 = tpu.matmul %50, %32, %cst_11 {dimension_numbers = #tpu.dot_dimension_numbers<[1], [0], [0], [1], [0, 0, 1, 1], [], []>} : vector<2x64xf32>, vector<64x256xf32>, vector<2x256xf32> -> vector<2x256xf32>
    %53 = arith.addf %51, %52 : vector<2x256xf32>
    %54 = arith.negf %53 : vector<2x256xf32>
    %55 = math.exp %54 : vector<2x256xf32>
    %cst_12 = arith.constant 1.000000e+00 : f32
    %56 = vector.broadcast %cst_12 : f32 to vector<2x256xf32>
    %57 = arith.addf %56, %55 : vector<2x256xf32>
    %58 = arith.divf %56, %57 : vector<2x256xf32>
    %59 = vector.extract_strided_slice %58 {offsets = [0, 0], sizes = [2, 64], strides = [1, 1]} : vector<2x256xf32> to vector<2x64xf32>
    %60 = vector.extract_strided_slice %58 {offsets = [0, 64], sizes = [2, 64], strides = [1, 1]} : vector<2x256xf32> to vector<2x64xf32>
    %61 = vector.extract_strided_slice %58 {offsets = [0, 192], sizes = [2, 64], strides = [1, 1]} : vector<2x256xf32> to vector<2x64xf32>
    %62 = vector.extract_strided_slice %53 {offsets = [0, 128], sizes = [2, 64], strides = [1, 1]} : vector<2x256xf32> to vector<2x64xf32>
    %63 = math.tanh %62 : vector<2x64xf32>
    %64 = arith.mulf %60, %48 : vector<2x64xf32>
    %65 = arith.mulf %59, %63 : vector<2x64xf32>
    %66 = arith.addf %64, %65 : vector<2x64xf32>
    %67 = math.tanh %66 : vector<2x64xf32>
    %68 = arith.mulf %61, %67 : vector<2x64xf32>
    %69 = vector.extract_strided_slice %5 {offsets = [8, 256], sizes = [2, 256], strides = [1, 1]} : vector<16x512xf32> to vector<2x256xf32>
    %cst_13 = arith.constant dense<0.000000e+00> : vector<2x256xf32>
    %70 = tpu.matmul %68, %32, %cst_13 {dimension_numbers = #tpu.dot_dimension_numbers<[1], [0], [0], [1], [0, 0, 1, 1], [], []>} : vector<2x64xf32>, vector<64x256xf32>, vector<2x256xf32> -> vector<2x256xf32>
    %71 = arith.addf %69, %70 : vector<2x256xf32>
    %72 = arith.negf %71 : vector<2x256xf32>
    %73 = math.exp %72 : vector<2x256xf32>
    %cst_14 = arith.constant 1.000000e+00 : f32
    %74 = vector.broadcast %cst_14 : f32 to vector<2x256xf32>
    %75 = arith.addf %74, %73 : vector<2x256xf32>
    %76 = arith.divf %74, %75 : vector<2x256xf32>
    %77 = vector.extract_strided_slice %76 {offsets = [0, 0], sizes = [2, 64], strides = [1, 1]} : vector<2x256xf32> to vector<2x64xf32>
    %78 = vector.extract_strided_slice %76 {offsets = [0, 64], sizes = [2, 64], strides = [1, 1]} : vector<2x256xf32> to vector<2x64xf32>
    %79 = vector.extract_strided_slice %76 {offsets = [0, 192], sizes = [2, 64], strides = [1, 1]} : vector<2x256xf32> to vector<2x64xf32>
    %80 = vector.extract_strided_slice %71 {offsets = [0, 128], sizes = [2, 64], strides = [1, 1]} : vector<2x256xf32> to vector<2x64xf32>
    %81 = math.tanh %80 : vector<2x64xf32>
    %82 = arith.mulf %78, %66 : vector<2x64xf32>
    %83 = arith.mulf %77, %81 : vector<2x64xf32>
    %84 = arith.addf %82, %83 : vector<2x64xf32>
    %85 = math.tanh %84 : vector<2x64xf32>
    %86 = arith.mulf %79, %85 : vector<2x64xf32>
    %87 = vector.extract_strided_slice %5 {offsets = [6, 256], sizes = [2, 256], strides = [1, 1]} : vector<16x512xf32> to vector<2x256xf32>
    %cst_15 = arith.constant dense<0.000000e+00> : vector<2x256xf32>
    %88 = tpu.matmul %86, %32, %cst_15 {dimension_numbers = #tpu.dot_dimension_numbers<[1], [0], [0], [1], [0, 0, 1, 1], [], []>} : vector<2x64xf32>, vector<64x256xf32>, vector<2x256xf32> -> vector<2x256xf32>
    %89 = arith.addf %87, %88 : vector<2x256xf32>
    %90 = arith.negf %89 : vector<2x256xf32>
    %91 = math.exp %90 : vector<2x256xf32>
    %cst_16 = arith.constant 1.000000e+00 : f32
    %92 = vector.broadcast %cst_16 : f32 to vector<2x256xf32>
    %93 = arith.addf %92, %91 : vector<2x256xf32>
    %94 = arith.divf %92, %93 : vector<2x256xf32>
    %95 = vector.extract_strided_slice %94 {offsets = [0, 0], sizes = [2, 64], strides = [1, 1]} : vector<2x256xf32> to vector<2x64xf32>
    %96 = vector.extract_strided_slice %94 {offsets = [0, 64], sizes = [2, 64], strides = [1, 1]} : vector<2x256xf32> to vector<2x64xf32>
    %97 = vector.extract_strided_slice %94 {offsets = [0, 192], sizes = [2, 64], strides = [1, 1]} : vector<2x256xf32> to vector<2x64xf32>
    %98 = vector.extract_strided_slice %89 {offsets = [0, 128], sizes = [2, 64], strides = [1, 1]} : vector<2x256xf32> to vector<2x64xf32>
    %99 = math.tanh %98 : vector<2x64xf32>
    %100 = arith.mulf %96, %84 : vector<2x64xf32>
    %101 = arith.mulf %95, %99 : vector<2x64xf32>
    %102 = arith.addf %100, %101 : vector<2x64xf32>
    %103 = math.tanh %102 : vector<2x64xf32>
    %104 = arith.mulf %97, %103 : vector<2x64xf32>
    %105 = vector.extract_strided_slice %5 {offsets = [4, 256], sizes = [2, 256], strides = [1, 1]} : vector<16x512xf32> to vector<2x256xf32>
    %cst_17 = arith.constant dense<0.000000e+00> : vector<2x256xf32>
    %106 = tpu.matmul %104, %32, %cst_17 {dimension_numbers = #tpu.dot_dimension_numbers<[1], [0], [0], [1], [0, 0, 1, 1], [], []>} : vector<2x64xf32>, vector<64x256xf32>, vector<2x256xf32> -> vector<2x256xf32>
    %107 = arith.addf %105, %106 : vector<2x256xf32>
    %108 = arith.negf %107 : vector<2x256xf32>
    %109 = math.exp %108 : vector<2x256xf32>
    %cst_18 = arith.constant 1.000000e+00 : f32
    %110 = vector.broadcast %cst_18 : f32 to vector<2x256xf32>
    %111 = arith.addf %110, %109 : vector<2x256xf32>
    %112 = arith.divf %110, %111 : vector<2x256xf32>
    %113 = vector.extract_strided_slice %112 {offsets = [0, 0], sizes = [2, 64], strides = [1, 1]} : vector<2x256xf32> to vector<2x64xf32>
    %114 = vector.extract_strided_slice %112 {offsets = [0, 64], sizes = [2, 64], strides = [1, 1]} : vector<2x256xf32> to vector<2x64xf32>
    %115 = vector.extract_strided_slice %112 {offsets = [0, 192], sizes = [2, 64], strides = [1, 1]} : vector<2x256xf32> to vector<2x64xf32>
    %116 = vector.extract_strided_slice %107 {offsets = [0, 128], sizes = [2, 64], strides = [1, 1]} : vector<2x256xf32> to vector<2x64xf32>
    %117 = math.tanh %116 : vector<2x64xf32>
    %118 = arith.mulf %114, %102 : vector<2x64xf32>
    %119 = arith.mulf %113, %117 : vector<2x64xf32>
    %120 = arith.addf %118, %119 : vector<2x64xf32>
    %121 = math.tanh %120 : vector<2x64xf32>
    %122 = arith.mulf %115, %121 : vector<2x64xf32>
    %123 = vector.extract_strided_slice %5 {offsets = [2, 256], sizes = [2, 256], strides = [1, 1]} : vector<16x512xf32> to vector<2x256xf32>
    %cst_19 = arith.constant dense<0.000000e+00> : vector<2x256xf32>
    %124 = tpu.matmul %122, %32, %cst_19 {dimension_numbers = #tpu.dot_dimension_numbers<[1], [0], [0], [1], [0, 0, 1, 1], [], []>} : vector<2x64xf32>, vector<64x256xf32>, vector<2x256xf32> -> vector<2x256xf32>
    %125 = arith.addf %123, %124 : vector<2x256xf32>
    %126 = arith.negf %125 : vector<2x256xf32>
    %127 = math.exp %126 : vector<2x256xf32>
    %cst_20 = arith.constant 1.000000e+00 : f32
    %128 = vector.broadcast %cst_20 : f32 to vector<2x256xf32>
    %129 = arith.addf %128, %127 : vector<2x256xf32>
    %130 = arith.divf %128, %129 : vector<2x256xf32>
    %131 = vector.extract_strided_slice %130 {offsets = [0, 0], sizes = [2, 64], strides = [1, 1]} : vector<2x256xf32> to vector<2x64xf32>
    %132 = vector.extract_strided_slice %130 {offsets = [0, 64], sizes = [2, 64], strides = [1, 1]} : vector<2x256xf32> to vector<2x64xf32>
    %133 = vector.extract_strided_slice %130 {offsets = [0, 192], sizes = [2, 64], strides = [1, 1]} : vector<2x256xf32> to vector<2x64xf32>
    %134 = vector.extract_strided_slice %125 {offsets = [0, 128], sizes = [2, 64], strides = [1, 1]} : vector<2x256xf32> to vector<2x64xf32>
    %135 = math.tanh %134 : vector<2x64xf32>
    %136 = arith.mulf %132, %120 : vector<2x64xf32>
    %137 = arith.mulf %131, %135 : vector<2x64xf32>
    %138 = arith.addf %136, %137 : vector<2x64xf32>
    %139 = math.tanh %138 : vector<2x64xf32>
    %140 = arith.mulf %133, %139 : vector<2x64xf32>
    %141 = vector.extract_strided_slice %5 {offsets = [0, 256], sizes = [2, 256], strides = [1, 1]} : vector<16x512xf32> to vector<2x256xf32>
    %cst_21 = arith.constant dense<0.000000e+00> : vector<2x256xf32>
    %142 = tpu.matmul %140, %32, %cst_21 {dimension_numbers = #tpu.dot_dimension_numbers<[1], [0], [0], [1], [0, 0, 1, 1], [], []>} : vector<2x64xf32>, vector<64x256xf32>, vector<2x256xf32> -> vector<2x256xf32>
    %143 = arith.addf %141, %142 : vector<2x256xf32>
    %144 = arith.negf %143 : vector<2x256xf32>
    %145 = math.exp %144 : vector<2x256xf32>
    %cst_22 = arith.constant 1.000000e+00 : f32
    %146 = vector.broadcast %cst_22 : f32 to vector<2x256xf32>
    %147 = arith.addf %146, %145 : vector<2x256xf32>
    %148 = arith.divf %146, %147 : vector<2x256xf32>
    %149 = vector.extract_strided_slice %148 {offsets = [0, 0], sizes = [2, 64], strides = [1, 1]} : vector<2x256xf32> to vector<2x64xf32>
    %150 = vector.extract_strided_slice %148 {offsets = [0, 64], sizes = [2, 64], strides = [1, 1]} : vector<2x256xf32> to vector<2x64xf32>
    %151 = vector.extract_strided_slice %148 {offsets = [0, 192], sizes = [2, 64], strides = [1, 1]} : vector<2x256xf32> to vector<2x64xf32>
    %152 = vector.extract_strided_slice %143 {offsets = [0, 128], sizes = [2, 64], strides = [1, 1]} : vector<2x256xf32> to vector<2x64xf32>
    %153 = math.tanh %152 : vector<2x64xf32>
    %154 = arith.mulf %150, %138 : vector<2x64xf32>
    %155 = arith.mulf %149, %153 : vector<2x64xf32>
    %156 = arith.addf %154, %155 : vector<2x64xf32>
    %157 = math.tanh %156 : vector<2x64xf32>
    %158 = arith.mulf %151, %157 : vector<2x64xf32>
    %159 = tpu.concatenate %18, %158 in 1 : vector<2x64xf32>, vector<2x64xf32> -> vector<2x128xf32>
    %c0_23 = arith.constant 0 : index
    %c0_24 = arith.constant 0 : index
    %160 = vector.load %arg2[%c0_23, %c0_24] : memref<16x32xf32, #tpu.memory_space<vmem>>, vector<16x32xf32>
    %c0_25 = arith.constant 0 : index
    %c0_26 = arith.constant 0 : index
    %161 = vector.load %arg6[%c0_25, %c0_26] : memref<32x512xf32, #tpu.memory_space<vmem>>, vector<32x512xf32>
    %cst_27 = arith.constant dense<0.000000e+00> : vector<16x512xf32>
    %162 = tpu.matmul %160, %161, %cst_27 {dimension_numbers = #tpu.dot_dimension_numbers<[1], [0], [0], [1], [0, 0, 1, 1], [], []>} : vector<16x32xf32>, vector<32x512xf32>, vector<16x512xf32> -> vector<16x512xf32>
    %c0_28 = arith.constant 0 : index
    %c0_29 = arith.constant 0 : index
    %163 = vector.load %arg7[%c0_28, %c0_29] : memref<1x512xf32, #tpu.memory_space<vmem>>, vector<1x512xf32>
    %164 = vector.broadcast %163 : vector<1x512xf32> to vector<16x512xf32>
    %165 = arith.addf %162, %164 : vector<16x512xf32>
    %166 = vector.extract_strided_slice %165 {offsets = [0, 0], sizes = [2, 256], strides = [1, 1]} : vector<16x512xf32> to vector<2x256xf32>
    %167 = arith.negf %166 : vector<2x256xf32>
    %168 = math.exp %167 : vector<2x256xf32>
    %cst_30 = arith.constant 1.000000e+00 : f32
    %169 = vector.broadcast %cst_30 : f32 to vector<2x256xf32>
    %170 = arith.addf %169, %168 : vector<2x256xf32>
    %171 = arith.divf %169, %170 : vector<2x256xf32>
    %172 = vector.extract_strided_slice %171 {offsets = [0, 0], sizes = [2, 64], strides = [1, 1]} : vector<2x256xf32> to vector<2x64xf32>
    %173 = vector.extract_strided_slice %171 {offsets = [0, 192], sizes = [2, 64], strides = [1, 1]} : vector<2x256xf32> to vector<2x64xf32>
    %174 = vector.extract_strided_slice %166 {offsets = [0, 128], sizes = [2, 64], strides = [1, 1]} : vector<2x256xf32> to vector<2x64xf32>
    %175 = math.tanh %174 : vector<2x64xf32>
    %176 = arith.mulf %172, %175 : vector<2x64xf32>
    %177 = math.tanh %176 : vector<2x64xf32>
    %178 = arith.mulf %173, %177 : vector<2x64xf32>
    %179 = vector.extract_strided_slice %165 {offsets = [14, 256], sizes = [2, 256], strides = [1, 1]} : vector<16x512xf32> to vector<2x256xf32>
    %180 = arith.negf %179 : vector<2x256xf32>
    %181 = math.exp %180 : vector<2x256xf32>
    %cst_31 = arith.constant 1.000000e+00 : f32
    %182 = vector.broadcast %cst_31 : f32 to vector<2x256xf32>
    %183 = arith.addf %182, %181 : vector<2x256xf32>
    %184 = arith.divf %182, %183 : vector<2x256xf32>
    %185 = vector.extract_strided_slice %184 {offsets = [0, 0], sizes = [2, 64], strides = [1, 1]} : vector<2x256xf32> to vector<2x64xf32>
    %186 = vector.extract_strided_slice %184 {offsets = [0, 192], sizes = [2, 64], strides = [1, 1]} : vector<2x256xf32> to vector<2x64xf32>
    %187 = vector.extract_strided_slice %179 {offsets = [0, 128], sizes = [2, 64], strides = [1, 1]} : vector<2x256xf32> to vector<2x64xf32>
    %188 = math.tanh %187 : vector<2x64xf32>
    %189 = arith.mulf %185, %188 : vector<2x64xf32>
    %190 = math.tanh %189 : vector<2x64xf32>
    %191 = arith.mulf %186, %190 : vector<2x64xf32>
    %c0_32 = arith.constant 0 : index
    %c0_33 = arith.constant 0 : index
    %192 = vector.load %arg8[%c0_32, %c0_33] : memref<64x256xf32, #tpu.memory_space<vmem>>, vector<64x256xf32>
    %193 = vector.extract_strided_slice %165 {offsets = [12, 256], sizes = [2, 256], strides = [1, 1]} : vector<16x512xf32> to vector<2x256xf32>
    %cst_34 = arith.constant dense<0.000000e+00> : vector<2x256xf32>
    %194 = tpu.matmul %191, %192, %cst_34 {dimension_numbers = #tpu.dot_dimension_numbers<[1], [0], [0], [1], [0, 0, 1, 1], [], []>} : vector<2x64xf32>, vector<64x256xf32>, vector<2x256xf32> -> vector<2x256xf32>
    %195 = arith.addf %193, %194 : vector<2x256xf32>
    %196 = arith.negf %195 : vector<2x256xf32>
    %197 = math.exp %196 : vector<2x256xf32>
    %cst_35 = arith.constant 1.000000e+00 : f32
    %198 = vector.broadcast %cst_35 : f32 to vector<2x256xf32>
    %199 = arith.addf %198, %197 : vector<2x256xf32>
    %200 = arith.divf %198, %199 : vector<2x256xf32>
    %201 = vector.extract_strided_slice %200 {offsets = [0, 0], sizes = [2, 64], strides = [1, 1]} : vector<2x256xf32> to vector<2x64xf32>
    %202 = vector.extract_strided_slice %200 {offsets = [0, 64], sizes = [2, 64], strides = [1, 1]} : vector<2x256xf32> to vector<2x64xf32>
    %203 = vector.extract_strided_slice %200 {offsets = [0, 192], sizes = [2, 64], strides = [1, 1]} : vector<2x256xf32> to vector<2x64xf32>
    %204 = vector.extract_strided_slice %195 {offsets = [0, 128], sizes = [2, 64], strides = [1, 1]} : vector<2x256xf32> to vector<2x64xf32>
    %205 = math.tanh %204 : vector<2x64xf32>
    %206 = arith.mulf %202, %189 : vector<2x64xf32>
    %207 = arith.mulf %201, %205 : vector<2x64xf32>
    %208 = arith.addf %206, %207 : vector<2x64xf32>
    %209 = math.tanh %208 : vector<2x64xf32>
    %210 = arith.mulf %203, %209 : vector<2x64xf32>
    %211 = vector.extract_strided_slice %165 {offsets = [10, 256], sizes = [2, 256], strides = [1, 1]} : vector<16x512xf32> to vector<2x256xf32>
    %cst_36 = arith.constant dense<0.000000e+00> : vector<2x256xf32>
    %212 = tpu.matmul %210, %192, %cst_36 {dimension_numbers = #tpu.dot_dimension_numbers<[1], [0], [0], [1], [0, 0, 1, 1], [], []>} : vector<2x64xf32>, vector<64x256xf32>, vector<2x256xf32> -> vector<2x256xf32>
    %213 = arith.addf %211, %212 : vector<2x256xf32>
    %214 = arith.negf %213 : vector<2x256xf32>
    %215 = math.exp %214 : vector<2x256xf32>
    %cst_37 = arith.constant 1.000000e+00 : f32
    %216 = vector.broadcast %cst_37 : f32 to vector<2x256xf32>
    %217 = arith.addf %216, %215 : vector<2x256xf32>
    %218 = arith.divf %216, %217 : vector<2x256xf32>
    %219 = vector.extract_strided_slice %218 {offsets = [0, 0], sizes = [2, 64], strides = [1, 1]} : vector<2x256xf32> to vector<2x64xf32>
    %220 = vector.extract_strided_slice %218 {offsets = [0, 64], sizes = [2, 64], strides = [1, 1]} : vector<2x256xf32> to vector<2x64xf32>
    %221 = vector.extract_strided_slice %218 {offsets = [0, 192], sizes = [2, 64], strides = [1, 1]} : vector<2x256xf32> to vector<2x64xf32>
    %222 = vector.extract_strided_slice %213 {offsets = [0, 128], sizes = [2, 64], strides = [1, 1]} : vector<2x256xf32> to vector<2x64xf32>
    %223 = math.tanh %222 : vector<2x64xf32>
    %224 = arith.mulf %220, %208 : vector<2x64xf32>
    %225 = arith.mulf %219, %223 : vector<2x64xf32>
    %226 = arith.addf %224, %225 : vector<2x64xf32>
    %227 = math.tanh %226 : vector<2x64xf32>
    %228 = arith.mulf %221, %227 : vector<2x64xf32>
    %229 = vector.extract_strided_slice %165 {offsets = [8, 256], sizes = [2, 256], strides = [1, 1]} : vector<16x512xf32> to vector<2x256xf32>
    %cst_38 = arith.constant dense<0.000000e+00> : vector<2x256xf32>
    %230 = tpu.matmul %228, %192, %cst_38 {dimension_numbers = #tpu.dot_dimension_numbers<[1], [0], [0], [1], [0, 0, 1, 1], [], []>} : vector<2x64xf32>, vector<64x256xf32>, vector<2x256xf32> -> vector<2x256xf32>
    %231 = arith.addf %229, %230 : vector<2x256xf32>
    %232 = arith.negf %231 : vector<2x256xf32>
    %233 = math.exp %232 : vector<2x256xf32>
    %cst_39 = arith.constant 1.000000e+00 : f32
    %234 = vector.broadcast %cst_39 : f32 to vector<2x256xf32>
    %235 = arith.addf %234, %233 : vector<2x256xf32>
    %236 = arith.divf %234, %235 : vector<2x256xf32>
    %237 = vector.extract_strided_slice %236 {offsets = [0, 0], sizes = [2, 64], strides = [1, 1]} : vector<2x256xf32> to vector<2x64xf32>
    %238 = vector.extract_strided_slice %236 {offsets = [0, 64], sizes = [2, 64], strides = [1, 1]} : vector<2x256xf32> to vector<2x64xf32>
    %239 = vector.extract_strided_slice %236 {offsets = [0, 192], sizes = [2, 64], strides = [1, 1]} : vector<2x256xf32> to vector<2x64xf32>
    %240 = vector.extract_strided_slice %231 {offsets = [0, 128], sizes = [2, 64], strides = [1, 1]} : vector<2x256xf32> to vector<2x64xf32>
    %241 = math.tanh %240 : vector<2x64xf32>
    %242 = arith.mulf %238, %226 : vector<2x64xf32>
    %243 = arith.mulf %237, %241 : vector<2x64xf32>
    %244 = arith.addf %242, %243 : vector<2x64xf32>
    %245 = math.tanh %244 : vector<2x64xf32>
    %246 = arith.mulf %239, %245 : vector<2x64xf32>
    %247 = vector.extract_strided_slice %165 {offsets = [6, 256], sizes = [2, 256], strides = [1, 1]} : vector<16x512xf32> to vector<2x256xf32>
    %cst_40 = arith.constant dense<0.000000e+00> : vector<2x256xf32>
    %248 = tpu.matmul %246, %192, %cst_40 {dimension_numbers = #tpu.dot_dimension_numbers<[1], [0], [0], [1], [0, 0, 1, 1], [], []>} : vector<2x64xf32>, vector<64x256xf32>, vector<2x256xf32> -> vector<2x256xf32>
    %249 = arith.addf %247, %248 : vector<2x256xf32>
    %250 = arith.negf %249 : vector<2x256xf32>
    %251 = math.exp %250 : vector<2x256xf32>
    %cst_41 = arith.constant 1.000000e+00 : f32
    %252 = vector.broadcast %cst_41 : f32 to vector<2x256xf32>
    %253 = arith.addf %252, %251 : vector<2x256xf32>
    %254 = arith.divf %252, %253 : vector<2x256xf32>
    %255 = vector.extract_strided_slice %254 {offsets = [0, 0], sizes = [2, 64], strides = [1, 1]} : vector<2x256xf32> to vector<2x64xf32>
    %256 = vector.extract_strided_slice %254 {offsets = [0, 64], sizes = [2, 64], strides = [1, 1]} : vector<2x256xf32> to vector<2x64xf32>
    %257 = vector.extract_strided_slice %254 {offsets = [0, 192], sizes = [2, 64], strides = [1, 1]} : vector<2x256xf32> to vector<2x64xf32>
    %258 = vector.extract_strided_slice %249 {offsets = [0, 128], sizes = [2, 64], strides = [1, 1]} : vector<2x256xf32> to vector<2x64xf32>
    %259 = math.tanh %258 : vector<2x64xf32>
    %260 = arith.mulf %256, %244 : vector<2x64xf32>
    %261 = arith.mulf %255, %259 : vector<2x64xf32>
    %262 = arith.addf %260, %261 : vector<2x64xf32>
    %263 = math.tanh %262 : vector<2x64xf32>
    %264 = arith.mulf %257, %263 : vector<2x64xf32>
    %265 = vector.extract_strided_slice %165 {offsets = [4, 256], sizes = [2, 256], strides = [1, 1]} : vector<16x512xf32> to vector<2x256xf32>
    %cst_42 = arith.constant dense<0.000000e+00> : vector<2x256xf32>
    %266 = tpu.matmul %264, %192, %cst_42 {dimension_numbers = #tpu.dot_dimension_numbers<[1], [0], [0], [1], [0, 0, 1, 1], [], []>} : vector<2x64xf32>, vector<64x256xf32>, vector<2x256xf32> -> vector<2x256xf32>
    %267 = arith.addf %265, %266 : vector<2x256xf32>
    %268 = arith.negf %267 : vector<2x256xf32>
    %269 = math.exp %268 : vector<2x256xf32>
    %cst_43 = arith.constant 1.000000e+00 : f32
    %270 = vector.broadcast %cst_43 : f32 to vector<2x256xf32>
    %271 = arith.addf %270, %269 : vector<2x256xf32>
    %272 = arith.divf %270, %271 : vector<2x256xf32>
    %273 = vector.extract_strided_slice %272 {offsets = [0, 0], sizes = [2, 64], strides = [1, 1]} : vector<2x256xf32> to vector<2x64xf32>
    %274 = vector.extract_strided_slice %272 {offsets = [0, 64], sizes = [2, 64], strides = [1, 1]} : vector<2x256xf32> to vector<2x64xf32>
    %275 = vector.extract_strided_slice %272 {offsets = [0, 192], sizes = [2, 64], strides = [1, 1]} : vector<2x256xf32> to vector<2x64xf32>
    %276 = vector.extract_strided_slice %267 {offsets = [0, 128], sizes = [2, 64], strides = [1, 1]} : vector<2x256xf32> to vector<2x64xf32>
    %277 = math.tanh %276 : vector<2x64xf32>
    %278 = arith.mulf %274, %262 : vector<2x64xf32>
    %279 = arith.mulf %273, %277 : vector<2x64xf32>
    %280 = arith.addf %278, %279 : vector<2x64xf32>
    %281 = math.tanh %280 : vector<2x64xf32>
    %282 = arith.mulf %275, %281 : vector<2x64xf32>
    %283 = vector.extract_strided_slice %165 {offsets = [2, 256], sizes = [2, 256], strides = [1, 1]} : vector<16x512xf32> to vector<2x256xf32>
    %cst_44 = arith.constant dense<0.000000e+00> : vector<2x256xf32>
    %284 = tpu.matmul %282, %192, %cst_44 {dimension_numbers = #tpu.dot_dimension_numbers<[1], [0], [0], [1], [0, 0, 1, 1], [], []>} : vector<2x64xf32>, vector<64x256xf32>, vector<2x256xf32> -> vector<2x256xf32>
    %285 = arith.addf %283, %284 : vector<2x256xf32>
    %286 = arith.negf %285 : vector<2x256xf32>
    %287 = math.exp %286 : vector<2x256xf32>
    %cst_45 = arith.constant 1.000000e+00 : f32
    %288 = vector.broadcast %cst_45 : f32 to vector<2x256xf32>
    %289 = arith.addf %288, %287 : vector<2x256xf32>
    %290 = arith.divf %288, %289 : vector<2x256xf32>
    %291 = vector.extract_strided_slice %290 {offsets = [0, 0], sizes = [2, 64], strides = [1, 1]} : vector<2x256xf32> to vector<2x64xf32>
    %292 = vector.extract_strided_slice %290 {offsets = [0, 64], sizes = [2, 64], strides = [1, 1]} : vector<2x256xf32> to vector<2x64xf32>
    %293 = vector.extract_strided_slice %290 {offsets = [0, 192], sizes = [2, 64], strides = [1, 1]} : vector<2x256xf32> to vector<2x64xf32>
    %294 = vector.extract_strided_slice %285 {offsets = [0, 128], sizes = [2, 64], strides = [1, 1]} : vector<2x256xf32> to vector<2x64xf32>
    %295 = math.tanh %294 : vector<2x64xf32>
    %296 = arith.mulf %292, %280 : vector<2x64xf32>
    %297 = arith.mulf %291, %295 : vector<2x64xf32>
    %298 = arith.addf %296, %297 : vector<2x64xf32>
    %299 = math.tanh %298 : vector<2x64xf32>
    %300 = arith.mulf %293, %299 : vector<2x64xf32>
    %301 = vector.extract_strided_slice %165 {offsets = [0, 256], sizes = [2, 256], strides = [1, 1]} : vector<16x512xf32> to vector<2x256xf32>
    %cst_46 = arith.constant dense<0.000000e+00> : vector<2x256xf32>
    %302 = tpu.matmul %300, %192, %cst_46 {dimension_numbers = #tpu.dot_dimension_numbers<[1], [0], [0], [1], [0, 0, 1, 1], [], []>} : vector<2x64xf32>, vector<64x256xf32>, vector<2x256xf32> -> vector<2x256xf32>
    %303 = arith.addf %301, %302 : vector<2x256xf32>
    %304 = arith.negf %303 : vector<2x256xf32>
    %305 = math.exp %304 : vector<2x256xf32>
    %cst_47 = arith.constant 1.000000e+00 : f32
    %306 = vector.broadcast %cst_47 : f32 to vector<2x256xf32>
    %307 = arith.addf %306, %305 : vector<2x256xf32>
    %308 = arith.divf %306, %307 : vector<2x256xf32>
    %309 = vector.extract_strided_slice %308 {offsets = [0, 0], sizes = [2, 64], strides = [1, 1]} : vector<2x256xf32> to vector<2x64xf32>
    %310 = vector.extract_strided_slice %308 {offsets = [0, 64], sizes = [2, 64], strides = [1, 1]} : vector<2x256xf32> to vector<2x64xf32>
    %311 = vector.extract_strided_slice %308 {offsets = [0, 192], sizes = [2, 64], strides = [1, 1]} : vector<2x256xf32> to vector<2x64xf32>
    %312 = vector.extract_strided_slice %303 {offsets = [0, 128], sizes = [2, 64], strides = [1, 1]} : vector<2x256xf32> to vector<2x64xf32>
    %313 = math.tanh %312 : vector<2x64xf32>
    %314 = arith.mulf %310, %298 : vector<2x64xf32>
    %315 = arith.mulf %309, %313 : vector<2x64xf32>
    %316 = arith.addf %314, %315 : vector<2x64xf32>
    %317 = math.tanh %316 : vector<2x64xf32>
    %318 = arith.mulf %311, %317 : vector<2x64xf32>
    %319 = tpu.concatenate %178, %318 in 1 : vector<2x64xf32>, vector<2x64xf32> -> vector<2x128xf32>
    %c0_48 = arith.constant 0 : index
    %c0_49 = arith.constant 0 : index
    %320 = vector.load %arg9[%c0_48, %c0_49] : memref<128x64xf32, #tpu.memory_space<vmem>>, vector<128x64xf32>
    %cst_50 = arith.constant dense<0.000000e+00> : vector<2x64xf32>
    %321 = tpu.matmul %159, %320, %cst_50 {dimension_numbers = #tpu.dot_dimension_numbers<[1], [0], [0], [1], [0, 0, 1, 1], [], []>} : vector<2x128xf32>, vector<128x64xf32>, vector<2x64xf32> -> vector<2x64xf32>
    %c0_51 = arith.constant 0 : index
    %c0_52 = arith.constant 0 : index
    %322 = vector.load %arg10[%c0_51, %c0_52] : memref<1x64xf32, #tpu.memory_space<vmem>>, vector<1x64xf32>
    %323 = vector.broadcast %322 : vector<1x64xf32> to vector<2x64xf32>
    %324 = arith.addf %321, %323 : vector<2x64xf32>
    %325 = math.tanh %324 : vector<2x64xf32>
    %c0_53 = arith.constant 0 : index
    %c0_54 = arith.constant 0 : index
    %326 = vector.load %arg11[%c0_53, %c0_54] : memref<128x64xf32, #tpu.memory_space<vmem>>, vector<128x64xf32>
    %cst_55 = arith.constant dense<0.000000e+00> : vector<2x64xf32>
    %327 = tpu.matmul %319, %326, %cst_55 {dimension_numbers = #tpu.dot_dimension_numbers<[1], [0], [0], [1], [0, 0, 1, 1], [], []>} : vector<2x128xf32>, vector<128x64xf32>, vector<2x64xf32> -> vector<2x64xf32>
    %c0_56 = arith.constant 0 : index
    %c0_57 = arith.constant 0 : index
    %328 = vector.load %arg12[%c0_56, %c0_57] : memref<1x64xf32, #tpu.memory_space<vmem>>, vector<1x64xf32>
    %329 = vector.broadcast %328 : vector<1x64xf32> to vector<2x64xf32>
    %330 = arith.addf %327, %329 : vector<2x64xf32>
    %331 = math.tanh %330 : vector<2x64xf32>
    %332 = arith.mulf %325, %325 : vector<2x64xf32>
    %cst_58 = arith.constant dense<0.000000e+00> : vector<2xf32>
    %333 = vector.multi_reduction <add>, %332, %cst_58 [1] : vector<2x64xf32> to vector<2xf32>
    %334 = vector.shape_cast %333 : vector<2xf32> to vector<2x1xf32>
    %335 = math.sqrt %334 : vector<2x1xf32>
    %336 = arith.mulf %331, %331 : vector<2x64xf32>
    %cst_59 = arith.constant dense<0.000000e+00> : vector<2xf32>
    %337 = vector.multi_reduction <add>, %336, %cst_59 [1] : vector<2x64xf32> to vector<2xf32>
    %338 = vector.shape_cast %337 : vector<2xf32> to vector<2x1xf32>
    %339 = math.sqrt %338 : vector<2x1xf32>
    %cst_60 = arith.constant 9.99999996E-13 : f32
    %340 = vector.broadcast %cst_60 : f32 to vector<2x1xf32>
    %341 = arith.maximumf %335, %340 : vector<2x1xf32>
    %342 = vector.broadcast %341 : vector<2x1xf32> to vector<2x64xf32>
    %343 = arith.divf %325, %342 : vector<2x64xf32>
    %cst_61 = arith.constant 9.99999996E-13 : f32
    %344 = vector.broadcast %cst_61 : f32 to vector<2x1xf32>
    %345 = arith.maximumf %339, %344 : vector<2x1xf32>
    %346 = vector.broadcast %345 : vector<2x1xf32> to vector<2x64xf32>
    %347 = arith.divf %331, %346 : vector<2x64xf32>
    %348 = arith.mulf %343, %347 : vector<2x64xf32>
    %cst_62 = arith.constant dense<0.000000e+00> : vector<2xf32>
    %349 = vector.multi_reduction <add>, %348, %cst_62 [1] : vector<2x64xf32> to vector<2xf32>
    %350 = vector.shape_cast %349 : vector<2xf32> to vector<2x1xf32>
    %c0_63 = arith.constant 0 : index
    %c0_64 = arith.constant 0 : index
    %351 = vector.load %arg13[%c0_63, %c0_64] : memref<2x1xf32, #tpu.memory_space<vmem>>, vector<2x1xf32>
    tpu.vector_store %arg13[%c0_63, %c0_64], %350 {strides = array<i32>} : memref<2x1xf32, #tpu.memory_space<vmem>>, vector<2x1xf32>,
    return
  }
  func.func @transform_0(%arg0: i32) -> (i32, i32) {
    %c0_i32 = arith.constant 0 : i32
    %c0_i32_0 = arith.constant 0 : i32
    %c0_i32_1 = arith.constant 0 : i32
    return %c0_i32, %c0_i32_0 : i32, i32
  }
  func.func @transform_1(%arg0: i32) -> (i32, i32) {
    %c0_i32 = arith.constant 0 : i32
    %c0_i32_0 = arith.constant 0 : i32
    %c0_i32_1 = arith.constant 0 : i32
    return %c0_i32, %c0_i32_0 : i32, i32
  }
  func.func @transform_2(%arg0: i32) -> (i32, i32) {
    %c0_i32 = arith.constant 0 : i32
    %c0_i32_0 = arith.constant 0 : i32
    %c0_i32_1 = arith.constant 0 : i32
    return %c0_i32, %c0_i32_0 : i32, i32
  }
  func.func @transform_3(%arg0: i32) -> (i32, i32) {
    %c0_i32 = arith.constant 0 : i32
    %c0_i32_0 = arith.constant 0 : i32
    %c0_i32_1 = arith.constant 0 : i32
    return %c0_i32, %c0_i32_0 : i32, i32
  }
  func.func @transform_4(%arg0: i32) -> (i32, i32) {
    %c0_i32 = arith.constant 0 : i32
    %c0_i32_0 = arith.constant 0 : i32
    %c0_i32_1 = arith.constant 0 : i32
    return %c0_i32, %c0_i32_0 : i32, i32
  }
  func.func @transform_5(%arg0: i32) -> (i32, i32) {
    %c0_i32 = arith.constant 0 : i32
    %c0_i32_0 = arith.constant 0 : i32
    %c0_i32_1 = arith.constant 0 : i32
    return %c0_i32, %c0_i32_0 : i32, i32
  }
  func.func @transform_6(%arg0: i32) -> (i32, i32) {
    %c0_i32 = arith.constant 0 : i32
    %c0_i32_0 = arith.constant 0 : i32
    %c0_i32_1 = arith.constant 0 : i32
    return %c0_i32, %c0_i32_0 : i32, i32
  }
  func.func @transform_7(%arg0: i32) -> (i32, i32) {
    %c0_i32 = arith.constant 0 : i32
    %c0_i32_0 = arith.constant 0 : i32
    %c0_i32_1 = arith.constant 0 : i32
    return %c0_i32, %c0_i32_0 : i32, i32
  }
  func.func @transform_8(%arg0: i32) -> (i32, i32) {
    %c0_i32 = arith.constant 0 : i32
    %c0_i32_0 = arith.constant 0 : i32
    %c0_i32_1 = arith.constant 0 : i32
    return %c0_i32, %c0_i32_0 : i32, i32
  }
  func.func @transform_9(%arg0: i32) -> (i32, i32) {
    %c0_i32 = arith.constant 0 : i32
    %c0_i32_0 = arith.constant 0 : i32
    %c0_i32_1 = arith.constant 0 : i32
    return %c0_i32, %c0_i32_0 : i32, i32
  }
  func.func @transform_10(%arg0: i32) -> (i32, i32) {
    %c0_i32 = arith.constant 0 : i32
    %c0_i32_0 = arith.constant 0 : i32
    %c0_i32_1 = arith.constant 0 : i32
    return %c0_i32, %c0_i32_0 : i32, i32
  }
  func.func @transform_11(%arg0: i32) -> (i32, i32) {
    %c0_i32 = arith.constant 0 : i32
    %c0_i32_0 = arith.constant 0 : i32
    %c0_i32_1 = arith.constant 0 : i32
    return %c0_i32, %c0_i32_0 : i32, i32
  }
  func.func @transform_12(%arg0: i32) -> (i32, i32) {
    %c0_i32 = arith.constant 0 : i32
    %c0_i32_0 = arith.constant 0 : i32
    %c0_i32_1 = arith.constant 0 : i32
    return %c0_i32, %c0_i32_0 : i32, i32
  }
}

</mosaic_0001>

<llo_original>
// kernel: lstm_dssm_forward.1
$region0: #{lstm_dssm_forward.1}
  #allocation0 [shape = 'u32[]', space=smem, size = 0x4, offset = 0x4, fixed_abs, tag = 'smem constant byte address 0x4 - core index']
  #allocation1 [shape = 'u32[72,128]{1,0:T(1,128)}', space=vmem, size = 0x9000, scoped, tag = 'internal scratch']
  %s0 = inlined_call_operand.vmem [shape: f32[16,32], index: 0, kind: input, shape index: {}]
  %s1 = inlined_call_operand.vmem [shape: f32[16,32], index: 1, kind: input, shape index: {}]
  %s2 = inlined_call_operand.hbm [shape: f32[32,512], index: 2, kind: input, shape index: {}]
  %s3 = inlined_call_operand.vmem [shape: f32[1,512], index: 3, kind: input, shape index: {}]
  %s4 = inlined_call_operand.hbm [shape: f32[64,256], index: 4, kind: input, shape index: {}]
  %s5 = inlined_call_operand.hbm [shape: f32[32,512], index: 5, kind: input, shape index: {}]
  %s6 = inlined_call_operand.vmem [shape: f32[1,512], index: 6, kind: input, shape index: {}]
  %s7 = inlined_call_operand.hbm [shape: f32[64,256], index: 7, kind: input, shape index: {}]
  %s8 = inlined_call_operand.vmem [shape: f32[128,64], index: 8, kind: input, shape index: {}]
  %s9 = inlined_call_operand.vmem [shape: f32[1,64], index: 9, kind: input, shape index: {}]
  %s10 = inlined_call_operand.vmem [shape: f32[128,64], index: 10, kind: input, shape index: {}]
  %s11 = inlined_call_operand.vmem [shape: f32[1,64], index: 11, kind: input, shape index: {}]
  %s12 = inlined_call_operand.vmem [shape: f32[2,1], index: 12, kind: output, shape index: {}]
  %s13 = sld [smem:[#allocation0]]
  $region74: #{lstm_dssm_forward.1} parent=0
    _
  %s15 = ssub.s32 1, %s13
  %s16 = scalar_select 0, %s15, %s13
  $region1: #{lstm_dssm_forward.1} parent=0
    #allocation2 [shape = 'u8[65536]{0}', space=vmem, size = 0x10000, scoped, tag = 'input window, operand 2, single buffered']
    #allocation3 [shape = 's32[1]{0}', space=sflag, size = 0x4, scoped, tag = 'scoped memory for lstm_dssm_forward.1']
    #allocation4 [shape = 'u8[65536]{0}', space=vmem, size = 0x10000, scoped, tag = 'input window, operand 4, single buffered']
    #allocation5 [shape = 's32[1]{0}', space=sflag, size = 0x4, scoped, tag = 'scoped memory for lstm_dssm_forward.1']
    #allocation6 [shape = 'u8[65536]{0}', space=vmem, size = 0x10000, scoped, tag = 'input window, operand 5, single buffered']
    #allocation7 [shape = 'u8[65536]{0}', space=vmem, size = 0x10000, scoped, tag = 'input window, operand 7, single buffered']
    #allocation8 [shape = 's32[1]{0}', space=sflag, size = 0x4, scoped, tag = 'scoped memory for lstm_dssm_forward.1']
    %17 = vsyncpa [#allocation3], 0
    %18 = vsyncpa [#allocation5], 0
    %19 = vsyncpa [#allocation8], 0
    // Predicated region
    $region2: #{lstm_dssm_forward.1} parent=1 // pred_check
      _
    $region3: #{lstm_dssm_forward.1} parent=1 // pred_check_branch
      %21 = sbr.rel (0) target = $region5
    $region4: #{lstm_dssm_forward.1} parent=1 // pred_region
      _
    $region5: #{lstm_dssm_forward.1} parent=1 // pred_fallthru
      _
    // Predicated region
    $region6: #{lstm_dssm_forward.1} parent=1 // pred_check
      _
    $region7: #{lstm_dssm_forward.1} parent=1 // pred_check_branch
      %23 = sbr.rel (0) target = $region9
    $region8: #{lstm_dssm_forward.1} parent=1 // pred_region
      _
    $region9: #{lstm_dssm_forward.1} parent=1 // pred_fallthru
      _
    // Predicated region
    $region10: #{lstm_dssm_forward.1} parent=1 // pred_check
      _
    $region11: #{lstm_dssm_forward.1} parent=1 // pred_check_branch
      %25 = sbr.rel (0) target = $region13
    $region12: #{lstm_dssm_forward.1} parent=1 // pred_region
      %27 = vsyncadd [#allocation3], 0
      %s28 = sshll.u32 %s2, 4
      %s29 = int_to_ptr.hbm [resolvable:$true] %s28
      %s30 = sshll.u32 [#allocation2], 4
      %s31 = int_to_ptr.vmem [resolvable:$true] %s30
      %36 = dma.hbm_to_vmem [thread:$0]  %s29, 2048, %s31, [#allocation3], 512, 512, 32
    $region13: #{lstm_dssm_forward.1} parent=1 // pred_fallthru
      _
    // Predicated region
    $region14: #{lstm_dssm_forward.1} parent=1 // pred_check
      _
    $region15: #{lstm_dssm_forward.1} parent=1 // pred_check_branch
      %38 = sbr.rel (0) target = $region17
    $region16: #{lstm_dssm_forward.1} parent=1 // pred_region
      _
    $region17: #{lstm_dssm_forward.1} parent=1 // pred_fallthru
      _
    // Predicated region
    $region18: #{lstm_dssm_forward.1} parent=1 // pred_check
      _
    $region19: #{lstm_dssm_forward.1} parent=1 // pred_check_branch
      %40 = sbr.rel (0) target = $region21
    $region20: #{lstm_dssm_forward.1} parent=1 // pred_region
      %42 = vsyncadd [#allocation5], 0
      %s43 = sshll.u32 %s4, 4
      %s44 = int_to_ptr.hbm [resolvable:$true] %s43
      %s45 = sshll.u32 [#allocation4], 4
      %s46 = int_to_ptr.vmem [resolvable:$true] %s45
      %51 = dma.hbm_to_vmem [thread:$0]  %s44, 2048, %s46, [#allocation5], 256, 256, 16
    $region21: #{lstm_dssm_forward.1} parent=1 // pred_fallthru
      _
    // Predicated region
    $region22: #{lstm_dssm_forward.1} parent=1 // pred_check
      _
    $region23: #{lstm_dssm_forward.1} parent=1 // pred_check_branch
      %53 = sbr.rel (0) target = $region25
    $region24: #{lstm_dssm_forward.1} parent=1 // pred_region
      %55 = vsyncadd [#allocation5], 0
      %s56 = sshll.u32 %s5, 4
      %s57 = int_to_ptr.hbm [resolvable:$true] %s56
      %s58 = sshll.u32 [#allocation6], 4
      %s59 = int_to_ptr.vmem [resolvable:$true] %s58
      %64 = dma.hbm_to_vmem [thread:$0]  %s57, 2048, %s59, [#allocation5], 512, 512, 32
    $region25: #{lstm_dssm_forward.1} parent=1 // pred_fallthru
      _
    // Predicated region
    $region26: #{lstm_dssm_forward.1} parent=1 // pred_check
      _
    $region27: #{lstm_dssm_forward.1} parent=1 // pred_check_branch
      %66 = sbr.rel (0) target = $region29
    $region28: #{lstm_dssm_forward.1} parent=1 // pred_region
      _
    $region29: #{lstm_dssm_forward.1} parent=1 // pred_fallthru
      _
    // Predicated region
    $region30: #{lstm_dssm_forward.1} parent=1 // pred_check
      _
    $region31: #{lstm_dssm_forward.1} parent=1 // pred_check_branch
      %68 = sbr.rel (0) target = $region33
    $region32: #{lstm_dssm_forward.1} parent=1 // pred_region
      %70 = vsyncadd [#allocation8], 0
      %s71 = sshll.u32 %s7, 4
      %s72 = int_to_ptr.hbm [resolvable:$true] %s71
      %s73 = sshll.u32 [#allocation7], 4
      %s74 = int_to_ptr.vmem [resolvable:$true] %s73
      %79 = dma.hbm_to_vmem [thread:$0]  %s72, 2048, %s74, [#allocation8], 256, 256, 16
    $region33: #{lstm_dssm_forward.1} parent=1 // pred_fallthru
      _
    // Predicated region
    $region34: #{lstm_dssm_forward.1} parent=1 // pred_check
      _
    $region35: #{lstm_dssm_forward.1} parent=1 // pred_check_branch
      %81 = sbr.rel (0) target = $region37
    $region36: #{lstm_dssm_forward.1} parent=1 // pred_region
      _
    $region37: #{lstm_dssm_forward.1} parent=1 // pred_fallthru
      _
    // Predicated region
    $region38: #{lstm_dssm_forward.1} parent=1 // pred_check
      _
    $region39: #{lstm_dssm_forward.1} parent=1 // pred_check_branch
      %83 = sbr.rel (0) target = $region41
    $region40: #{lstm_dssm_forward.1} parent=1 // pred_region
      _
    $region41: #{lstm_dssm_forward.1} parent=1 // pred_fallthru
      _
    // Predicated region
    $region42: #{lstm_dssm_forward.1} parent=1 // pred_check
      _
    $region43: #{lstm_dssm_forward.1} parent=1 // pred_check_branch
      %85 = sbr.rel (0) target = $region45
    $region44: #{lstm_dssm_forward.1} parent=1 // pred_region
      _
    $region45: #{lstm_dssm_forward.1} parent=1 // pred_fallthru
      _
    // Predicated region
    $region46: #{lstm_dssm_forward.1} parent=1 // pred_check
      _
    $region47: #{lstm_dssm_forward.1} parent=1 // pred_check_branch
      %87 = sbr.rel (0) target = $region49
    $region48: #{lstm_dssm_forward.1} parent=1 // pred_region
      _
    $region49: #{lstm_dssm_forward.1} parent=1 // pred_fallthru
      _
    // Predicated region
    $region50: #{lstm_dssm_forward.1} parent=1 // pred_check
      _
    $region51: #{lstm_dssm_forward.1} parent=1 // pred_check_branch
      %89 = sbr.rel (0) target = $region53
    $region52: #{lstm_dssm_forward.1} parent=1 // pred_region
      %91 = dma.done [#allocation3], 2048
    $region53: #{lstm_dssm_forward.1} parent=1 // pred_fallthru
      _
    // Predicated region
    $region54: #{lstm_dssm_forward.1} parent=1 // pred_check
      _
    $region55: #{lstm_dssm_forward.1} parent=1 // pred_check_branch
      %93 = sbr.rel (0) target = $region57
    $region56: #{lstm_dssm_forward.1} parent=1 // pred_region
      %95 = dma.done [#allocation5], 2048
    $region57: #{lstm_dssm_forward.1} parent=1 // pred_fallthru
      _
    // Predicated region
    $region58: #{lstm_dssm_forward.1} parent=1 // pred_check
      _
    $region59: #{lstm_dssm_forward.1} parent=1 // pred_check_branch
      %97 = sbr.rel (0) target = $region61
    $region60: #{lstm_dssm_forward.1} parent=1 // pred_region
      %99 = dma.done [#allocation5], 2048
    $region61: #{lstm_dssm_forward.1} parent=1 // pred_fallthru
      _
    // Predicated region
    $region62: #{lstm_dssm_forward.1} parent=1 // pred_check
      _
    $region63: #{lstm_dssm_forward.1} parent=1 // pred_check_branch
      %101 = sbr.rel (0) target = $region65
    $region64: #{lstm_dssm_forward.1} parent=1 // pred_region
      %103 = dma.done [#allocation8], 2048
    $region65: #{lstm_dssm_forward.1} parent=1 // pred_fallthru
      _
    %v104 = vld [vmem:[%s0] sm:$0xff]
    %v105 = vld [vmem:[%s0 + $0x8] sm:$0xff]
    %v106 = vld [vmem:[#allocation2] sm:$0xff]
    %v107 = vld [vmem:[#allocation2 + $0x8] sm:$0xff]
    %v108 = vld [vmem:[#allocation2 + $0x10] sm:$0xff]
    %v109 = vld [vmem:[#allocation2 + $0x18] sm:$0xff]
    %v110 = vld [vmem:[#allocation2 + $0x20] sm:$0xff]
    %v111 = vld [vmem:[#allocation2 + $0x28] sm:$0xff]
    %v112 = vld [vmem:[#allocation2 + $0x30] sm:$0xff]
    %v113 = vld [vmem:[#allocation2 + $0x38] sm:$0xff]
    %v114 = vld [vmem:[#allocation2 + $0x40] sm:$0xff]
    %v115 = vld [vmem:[#allocation2 + $0x48] sm:$0xff]
    %v116 = vld [vmem:[#allocation2 + $0x50] sm:$0xff]
    %v117 = vld [vmem:[#allocation2 + $0x58] sm:$0xff]
    %v118 = vld [vmem:[#allocation2 + $0x60] sm:$0xff]
    %v119 = vld [vmem:[#allocation2 + $0x68] sm:$0xff]
    %v120 = vld [vmem:[#allocation2 + $0x70] sm:$0xff]
    %v121 = vld [vmem:[#allocation2 + $0x78] sm:$0xff]
    %v122 = vld [vmem:[%s3] sm:$0xf]
    %v124 = vperm.slane %v122, 0
    %v125 = vperm.slane %v122, 1
    %v126 = vperm.slane %v122, 2
    %v127 = vperm.slane %v122, 3
    %vm132 = vcmask 261120
    %v134 = vsel %vm132, %v104, 0
    %v137 = vsel %vm132, %v105, 0
    %139 = vmatpush.msra.mxu0 0.0
    %140 = vmatpush.msra.mxu0 0.0
    %141 = vmatpush.msra.mxu0 0.0
    %142 = vmatpush.msra.mxu0 0.0
    %143 = vmatpush.msra.mxu0 0.0
    %144 = vmatpush.msra.mxu0 0.0
    %145 = vmatpush.msra.mxu0 0.0
    %146 = vmatpush.msra.mxu0 0.0
    %147 = vmatpush.msra.mxu0 0.0
    %148 = vmatpush.msra.mxu0 0.0
    %149 = vmatpush.msra.mxu0 0.0
    %150 = vmatpush.msra.mxu0 0.0
    %151 = vmatpush.msra.mxu0 %v118
    %152 = vmatpush.msra.mxu0 %v114
    %153 = vmatpush.msra.mxu0 %v110
    %154 = vmatpush.msra.mxu0 %v106
    %155 = vmatmul.f32.gmra.mxu0 %v134
    %v156 = vpop.f32.mrf.mxu0
    %v157 = vadd.f32 %v124, %v156
    %158 = vmatmul.f32.gmra.mxu0 %v137
    %v159 = vpop.f32.mrf.mxu0
    %160 = vdwg.mxu0
    %161 = vmatpush.msra.mxu0 0.0
    %162 = vmatpush.msra.mxu0 0.0
    %163 = vmatpush.msra.mxu0 0.0
    %164 = vmatpush.msra.mxu0 0.0
    %165 = vmatpush.msra.mxu0 0.0
    %166 = vmatpush.msra.mxu0 0.0
    %167 = vmatpush.msra.mxu0 0.0
    %168 = vmatpush.msra.mxu0 0.0
    %169 = vmatpush.msra.mxu0 0.0
    %170 = vmatpush.msra.mxu0 0.0
    %171 = vmatpush.msra.mxu0 0.0
    %172 = vmatpush.msra.mxu0 0.0
    %173 = vmatpush.msra.mxu0 %v119
    %174 = vmatpush.msra.mxu0 %v115
    %175 = vmatpush.msra.mxu0 %v111
    %176 = vmatpush.msra.mxu0 %v107
    %177 = vmatmul.f32.gmra.mxu0 %v134
    %v178 = vpop.f32.mrf.mxu0
    %v179 = vadd.f32 %v125, %v178
    %180 = vmatmul.f32.gmra.mxu0 %v137
    %v181 = vpop.f32.mrf.mxu0
    %182 = vdwg.mxu0
    %183 = vmatpush.msra.mxu0 0.0
    %184 = vmatpush.msra.mxu0 0.0
    %185 = vmatpush.msra.mxu0 0.0
    %186 = vmatpush.msra.mxu0 0.0
    %187 = vmatpush.msra.mxu0 0.0
    %188 = vmatpush.msra.mxu0 0.0
    %189 = vmatpush.msra.mxu0 0.0
    %190 = vmatpush.msra.mxu0 0.0
    %191 = vmatpush.msra.mxu0 0.0
    %192 = vmatpush.msra.mxu0 0.0
    %193 = vmatpush.msra.mxu0 0.0
    %194 = vmatpush.msra.mxu0 0.0
    %195 = vmatpush.msra.mxu0 %v120
    %196 = vmatpush.msra.mxu0 %v116
    %197 = vmatpush.msra.mxu0 %v112
    %198 = vmatpush.msra.mxu0 %v108
    %199 = vmatmul.f32.gmra.mxu0 %v134
    %v200 = vpop.f32.mrf.mxu0
    %v201 = vadd.f32 %v126, %v200
    %202 = vmatmul.f32.gmra.mxu0 %v137
    %v203 = vpop.f32.mrf.mxu0
    %v204 = vadd.f32 %v126, %v203
    %205 = vdwg.mxu0
    %206 = vmatpush.msra.mxu0 0.0
    %207 = vmatpush.msra.mxu0 0.0
    %208 = vmatpush.msra.mxu0 0.0
    %209 = vmatpush.msra.mxu0 0.0
    %210 = vmatpush.msra.mxu0 0.0
    %211 = vmatpush.msra.mxu0 0.0
    %212 = vmatpush.msra.mxu0 0.0
    %213 = vmatpush.msra.mxu0 0.0
    %214 = vmatpush.msra.mxu0 0.0
    %215 = vmatpush.msra.mxu0 0.0
    %216 = vmatpush.msra.mxu0 0.0
    %217 = vmatpush.msra.mxu0 0.0
    %218 = vmatpush.msra.mxu0 %v121
    %219 = vmatpush.msra.mxu0 %v117
    %220 = vmatpush.msra.mxu0 %v113
    %221 = vmatpush.msra.mxu0 %v109
    %222 = vmatmul.f32.gmra.mxu0 %v134
    %v223 = vpop.f32.mrf.mxu0
    %v224 = vadd.f32 %v127, %v223
    %225 = vmatmul.f32.gmra.mxu0 %v137
    %v226 = vpop.f32.mrf.mxu0
    %v227 = vadd.f32 %v127, %v226
    %228 = vdwg.mxu0
    %v229 = vxor.u32 %v157, 2147483648
    %v230 = vxor.u32 %v179, 2147483648
    %v231 = vmul.f32 %v229, 1.442695
    %v232 = vpow.pop %v231
    %v233 = vmul.f32 %v230, 1.442695
    %v234 = vpow.pop %v233
    %v235 = vadd.f32 %v232, 1.0
    %v236 = vadd.f32 %v234, 1.0
    %v237 = vrcp.pop %v235
    %v238 = vmul.f32 %v235, %v237
    %v239 = vsub.f32 1.0, %v238
    %v240 = vmul.f32 %v237, %v239
    %v241 = vadd.f32 %v237, %v240
    %vm242 = vweird.f32 %v235
    %vm243 = vweird.f32 %v237
    %vm244 = vmor %vm242, %vm243
    %v245 = vsel %vm244, %v237, %v241
    %v246 = vand.u32 2147483647, %v235
    %vm247 = vcmp.eq.f32.partialorder %v246, 8.507059e+37
    %v248 = vand.u32 %v235, 2147483648
    %v249 = vor.u32 1.1754944e-38, %v248
    %v250 = vsel %vm247, %v249, %v245
    %v251 = vmul.f32 1.0, %v250
    %v252 = vrcp.pop %v236
    %v253 = vmul.f32 %v236, %v252
    %v254 = vsub.f32 1.0, %v253
    %v255 = vmul.f32 %v252, %v254
    %v256 = vadd.f32 %v252, %v255
    %vm257 = vweird.f32 %v236
    %vm258 = vweird.f32 %v252
    %vm259 = vmor %vm257, %vm258
    %v260 = vsel %vm259, %v252, %v256
    %v261 = vand.u32 2147483647, %v236
    %vm262 = vcmp.eq.f32.partialorder %v261, 8.507059e+37
    %v263 = vand.u32 %v236, 2147483648
    %v264 = vor.u32 1.1754944e-38, %v263
    %v265 = vsel %vm262, %v264, %v260
    %v266 = vmul.f32 1.0, %v265
    %v267 = vtanh.pop %v179
    %v268 = vmul.f32 %v251, %v267
    %v269 = vtanh.pop %v268
    %271 = vrot.lane.b32.xlu0 %v269, 64
    %v272 = vpop.permute.xlu0 %271
    %v274 = vmul.f32 %v266, %v272
    %v275 = vxor.u32 %v204, 2147483648
    %v276 = vxor.u32 %v227, 2147483648
    %v277 = vmul.f32 %v275, 1.442695
    %v278 = vpow.pop %v277
    %v279 = vmul.f32 %v276, 1.442695
    %v280 = vpow.pop %v279
    %v281 = vadd.f32 %v278, 1.0
    %v282 = vadd.f32 %v280, 1.0
    %v283 = vrcp.pop %v281
    %v284 = vmul.f32 %v281, %v283
    %v285 = vsub.f32 1.0, %v284
    %v286 = vmul.f32 %v283, %v285
    %v287 = vadd.f32 %v283, %v286
    %vm288 = vweird.f32 %v281
    %vm289 = vweird.f32 %v283
    %vm290 = vmor %vm288, %vm289
    %v291 = vsel %vm290, %v283, %v287
    %v292 = vand.u32 2147483647, %v281
    %vm293 = vcmp.eq.f32.partialorder %v292, 8.507059e+37
    %v294 = vand.u32 %v281, 2147483648
    %v295 = vor.u32 1.1754944e-38, %v294
    %v296 = vsel %vm293, %v295, %v291
    %v297 = vmul.f32 1.0, %v296
    %v298 = vrcp.pop %v282
    %v299 = vmul.f32 %v282, %v298
    %v300 = vsub.f32 1.0, %v299
    %v301 = vmul.f32 %v298, %v300
    %v302 = vadd.f32 %v298, %v301
    %vm303 = vweird.f32 %v282
    %vm304 = vweird.f32 %v298
    %vm305 = vmor %vm303, %vm304
    %v306 = vsel %vm305, %v298, %v302
    %v307 = vand.u32 2147483647, %v282
    %vm308 = vcmp.eq.f32.partialorder %v307, 8.507059e+37
    %v309 = vand.u32 %v282, 2147483648
    %v310 = vor.u32 1.1754944e-38, %v309
    %v311 = vsel %vm308, %v310, %v306
    %v312 = vmul.f32 1.0, %v311
    %v313 = vtanh.pop %v227
    %v314 = vmul.f32 %v297, %v313
    %v315 = vtanh.pop %v314
    %317 = vrot.lane.b32.xlu0 %v315, 64
    %v318 = vpop.permute.xlu0 %317
    %v320 = vmul.f32 %v312, %v318
    %v321 = vld [vmem:[#allocation4] sm:$0xff]
    %v322 = vld [vmem:[#allocation4 + $0x8] sm:$0xff]
    %v323 = vld [vmem:[#allocation4 + $0x10] sm:$0xff]
    %v324 = vld [vmem:[#allocation4 + $0x18] sm:$0xff]
    %v325 = vld [vmem:[#allocation4 + $0x20] sm:$0xff]
    %v326 = vld [vmem:[#allocation4 + $0x28] sm:$0xff]
    %v327 = vld [vmem:[#allocation4 + $0x30] sm:$0xff]
    %v328 = vld [vmem:[#allocation4 + $0x38] sm:$0xff]
    %v329 = vld [vmem:[#allocation4 + $0x40] sm:$0xff]
    %v330 = vld [vmem:[#allocation4 + $0x48] sm:$0xff]
    %v331 = vld [vmem:[#allocation4 + $0x50] sm:$0xff]
    %v332 = vld [vmem:[#allocation4 + $0x58] sm:$0xff]
    %v333 = vld [vmem:[#allocation4 + $0x60] sm:$0xff]
    %v334 = vld [vmem:[#allocation4 + $0x68] sm:$0xff]
    %v335 = vld [vmem:[#allocation4 + $0x70] sm:$0xff]
    %v336 = vld [vmem:[#allocation4 + $0x78] sm:$0xff]
    %v338 = vrot.slane %v320, 6
    %339 = vrot.lane.b32.xlu0 %v338, 64
    %v340 = vpop.permute.xlu0 %339
    %vm341 = vcmask 523264
    %v342 = vsel %vm341, %v340, 0
    %344 = vmatpush.msra.mxu0 0.0
    %345 = vmatpush.msra.mxu0 0.0
    %346 = vmatpush.msra.mxu0 0.0
    %347 = vmatpush.msra.mxu0 0.0
    %348 = vmatpush.msra.mxu0 0.0
    %349 = vmatpush.msra.mxu0 0.0
    %350 = vmatpush.msra.mxu0 0.0
    %351 = vmatpush.msra.mxu0 0.0
    %352 = vmatpush.msra.mxu0 %v335
    %353 = vmatpush.msra.mxu0 %v333
    %354 = vmatpush.msra.mxu0 %v331
    %355 = vmatpush.msra.mxu0 %v329
    %356 = vmatpush.msra.mxu0 %v327
    %357 = vmatpush.msra.mxu0 %v325
    %358 = vmatpush.msra.mxu0 %v323
    %359 = vmatpush.msra.mxu0 %v321
    %360 = vmatmul.f32.gmra.mxu0 %v342
    %v361 = vpop.f32.mrf.mxu0
    %v362 = vadd.f32 0.0, %v361
    %363 = vdwg.mxu0
    %364 = vmatpush.msra.mxu0 0.0
    %365 = vmatpush.msra.mxu0 0.0
    %366 = vmatpush.msra.mxu0 0.0
    %367 = vmatpush.msra.mxu0 0.0
    %368 = vmatpush.msra.mxu0 0.0
    %369 = vmatpush.msra.mxu0 0.0
    %370 = vmatpush.msra.mxu0 0.0
    %371 = vmatpush.msra.mxu0 0.0
    %372 = vmatpush.msra.mxu0 %v336
    %373 = vmatpush.msra.mxu0 %v334
    %374 = vmatpush.msra.mxu0 %v332
    %375 = vmatpush.msra.mxu0 %v330
    %376 = vmatpush.msra.mxu0 %v328
    %377 = vmatpush.msra.mxu0 %v326
    %378 = vmatpush.msra.mxu0 %v324
    %379 = vmatpush.msra.mxu0 %v322
    %380 = vmatmul.f32.gmra.mxu0 %v342
    %v381 = vpop.f32.mrf.mxu0
    %v382 = vadd.f32 0.0, %v381
    %383 = vdwg.mxu0
    %v386 = vrot.slane %v362, 4
    %v387 = vrot.slane %v382, 4
    %v390 = vadd.f32 %v204, %v386
    %v391 = vadd.f32 %v227, %v387
    %v392 = vxor.u32 %v390, 2147483648
    %v393 = vxor.u32 %v391, 2147483648
    %v394 = vmul.f32 %v392, 1.442695
    %v395 = vpow.pop %v394
    %v396 = vmul.f32 %v393, 1.442695
    %v397 = vpow.pop %v396
    %v398 = vadd.f32 %v395, 1.0
    %v399 = vadd.f32 %v397, 1.0
    %v400 = vrcp.pop %v398
    %v401 = vmul.f32 %v398, %v400
    %v402 = vsub.f32 1.0, %v401
    %v403 = vmul.f32 %v400, %v402
    %v404 = vadd.f32 %v400, %v403
    %vm405 = vweird.f32 %v398
    %vm406 = vweird.f32 %v400
    %vm407 = vmor %vm405, %vm406
    %v408 = vsel %vm407, %v400, %v404
    %v409 = vand.u32 2147483647, %v398
    %vm410 = vcmp.eq.f32.partialorder %v409, 8.507059e+37
    %v411 = vand.u32 %v398, 2147483648
    %v412 = vor.u32 1.1754944e-38, %v411
    %v413 = vsel %vm410, %v412, %v408
    %v414 = vmul.f32 1.0, %v413
    %v415 = vrcp.pop %v399
    %v416 = vmul.f32 %v399, %v415
    %v417 = vsub.f32 1.0, %v416
    %v418 = vmul.f32 %v415, %v417
    %v419 = vadd.f32 %v415, %v418
    %vm420 = vweird.f32 %v399
    %vm421 = vweird.f32 %v415
    %vm422 = vmor %vm420, %vm421
    %v423 = vsel %vm422, %v415, %v419
    %v424 = vand.u32 2147483647, %v399
    %vm425 = vcmp.eq.f32.partialorder %v424, 8.507059e+37
    %v426 = vand.u32 %v399, 2147483648
    %v427 = vor.u32 1.1754944e-38, %v426
    %v428 = vsel %vm425, %v427, %v423
    %v429 = vmul.f32 1.0, %v428
    %v430 = vtanh.pop %v391
    %v432 = vrot.slane %v314, 2
    %433 = vrot.lane.b32.xlu0 %v432, 64
    %v434 = vpop.permute.xlu0 %433
    %v436 = vmul.f32 %v414, %v434
    %v437 = vmul.f32 %v414, %v430
    %439 = vrot.lane.b32.xlu0 %v437, 64
    %v440 = vpop.permute.xlu0 %439
    %v442 = vadd.f32 %v436, %v440
    %v443 = vtanh.pop %v442
    %v444 = vmul.f32 %v429, %v443
    %v446 = vrot.slane %v444, 4
    %447 = vrot.lane.b32.xlu0 %v446, 64
    %v448 = vpop.permute.xlu0 %447
    %v449 = vsel %vm341, %v448, 0
    %451 = vmatpush.msra.mxu0 0.0
    %452 = vmatpush.msra.mxu0 0.0
    %453 = vmatpush.msra.mxu0 0.0
    %454 = vmatpush.msra.mxu0 0.0
    %455 = vmatpush.msra.mxu0 0.0
    %456 = vmatpush.msra.mxu0 0.0
    %457 = vmatpush.msra.mxu0 0.0
    %458 = vmatpush.msra.mxu0 0.0
    %459 = vmatpush.msra.mxu0 %v335
    %460 = vmatpush.msra.mxu0 %v333
    %461 = vmatpush.msra.mxu0 %v331
    %462 = vmatpush.msra.mxu0 %v329
    %463 = vmatpush.msra.mxu0 %v327
    %464 = vmatpush.msra.mxu0 %v325
    %465 = vmatpush.msra.mxu0 %v323
    %466 = vmatpush.msra.mxu0 %v321
    %467 = vmatmul.f32.gmra.mxu0 %v449
    %v468 = vpop.f32.mrf.mxu0
    %v469 = vadd.f32 0.0, %v468
    %470 = vdwg.mxu0
    %471 = vmatpush.msra.mxu0 0.0
    %472 = vmatpush.msra.mxu0 0.0
    %473 = vmatpush.msra.mxu0 0.0
    %474 = vmatpush.msra.mxu0 0.0
    %475 = vmatpush.msra.mxu0 0.0
    %476 = vmatpush.msra.mxu0 0.0
    %477 = vmatpush.msra.mxu0 0.0
    %478 = vmatpush.msra.mxu0 0.0
    %479 = vmatpush.msra.mxu0 %v336
    %480 = vmatpush.msra.mxu0 %v334
    %481 = vmatpush.msra.mxu0 %v332
    %482 = vmatpush.msra.mxu0 %v330
    %483 = vmatpush.msra.mxu0 %v328
    %484 = vmatpush.msra.mxu0 %v326
    %485 = vmatpush.msra.mxu0 %v324
    %486 = vmatpush.msra.mxu0 %v322
    %487 = vmatmul.f32.gmra.mxu0 %v449
    %v488 = vpop.f32.mrf.mxu0
    %v489 = vadd.f32 0.0, %v488
    %490 = vdwg.mxu0
    %v493 = vrot.slane %v469, 6
    %v494 = vrot.slane %v489, 6
    %v497 = vadd.f32 %v204, %v493
    %v498 = vadd.f32 %v227, %v494
    %v499 = vxor.u32 %v497, 2147483648
    %v500 = vxor.u32 %v498, 2147483648
    %v501 = vmul.f32 %v499, 1.442695
    %v502 = vpow.pop %v501
    %v503 = vmul.f32 %v500, 1.442695
    %v504 = vpow.pop %v503
    %v505 = vadd.f32 %v502, 1.0
    %v506 = vadd.f32 %v504, 1.0
    %v507 = vrcp.pop %v505
    %v508 = vmul.f32 %v505, %v507
    %v509 = vsub.f32 1.0, %v508
    %v510 = vmul.f32 %v507, %v509
    %v511 = vadd.f32 %v507, %v510
    %vm512 = vweird.f32 %v505
    %vm513 = vweird.f32 %v507
    %vm514 = vmor %vm512, %vm513
    %v515 = vsel %vm514, %v507, %v511
    %v516 = vand.u32 2147483647, %v505
    %vm517 = vcmp.eq.f32.partialorder %v516, 8.507059e+37
    %v518 = vand.u32 %v505, 2147483648
    %v519 = vor.u32 1.1754944e-38, %v518
    %v520 = vsel %vm517, %v519, %v515
    %v521 = vmul.f32 1.0, %v520
    %v522 = vrcp.pop %v506
    %v523 = vmul.f32 %v506, %v522
    %v524 = vsub.f32 1.0, %v523
    %v525 = vmul.f32 %v522, %v524
    %v526 = vadd.f32 %v522, %v525
    %vm527 = vweird.f32 %v506
    %vm528 = vweird.f32 %v522
    %vm529 = vmor %vm527, %vm528
    %v530 = vsel %vm529, %v522, %v526
    %v531 = vand.u32 2147483647, %v506
    %vm532 = vcmp.eq.f32.partialorder %v531, 8.507059e+37
    %v533 = vand.u32 %v506, 2147483648
    %v534 = vor.u32 1.1754944e-38, %v533
    %v535 = vsel %vm532, %v534, %v530
    %v536 = vmul.f32 1.0, %v535
    %v537 = vtanh.pop %v498
    %v539 = vrot.slane %v442, 2
    %v541 = vmul.f32 %v521, %v539
    %v542 = vmul.f32 %v521, %v537
    %544 = vrot.lane.b32.xlu0 %v542, 64
    %v545 = vpop.permute.xlu0 %544
    %v547 = vadd.f32 %v541, %v545
    %v548 = vtanh.pop %v547
    %v549 = vmul.f32 %v536, %v548
    %v551 = vrot.slane %v549, 2
    %552 = vrot.lane.b32.xlu0 %v551, 64
    %v553 = vpop.permute.xlu0 %552
    %v554 = vsel %vm341, %v553, 0
    %556 = vmatpush.msra.mxu0 0.0
    %557 = vmatpush.msra.mxu0 0.0
    %558 = vmatpush.msra.mxu0 0.0
    %559 = vmatpush.msra.mxu0 0.0
    %560 = vmatpush.msra.mxu0 0.0
    %561 = vmatpush.msra.mxu0 0.0
    %562 = vmatpush.msra.mxu0 0.0
    %563 = vmatpush.msra.mxu0 0.0
    %564 = vmatpush.msra.mxu0 %v335
    %565 = vmatpush.msra.mxu0 %v333
    %566 = vmatpush.msra.mxu0 %v331
    %567 = vmatpush.msra.mxu0 %v329
    %568 = vmatpush.msra.mxu0 %v327
    %569 = vmatpush.msra.mxu0 %v325
    %570 = vmatpush.msra.mxu0 %v323
    %571 = vmatpush.msra.mxu0 %v321
    %572 = vmatmul.f32.gmra.mxu0 %v554
    %v573 = vpop.f32.mrf.mxu0
    %v574 = vadd.f32 0.0, %v573
    %575 = vdwg.mxu0
    %576 = vmatpush.msra.mxu0 0.0
    %577 = vmatpush.msra.mxu0 0.0
    %578 = vmatpush.msra.mxu0 0.0
    %579 = vmatpush.msra.mxu0 0.0
    %580 = vmatpush.msra.mxu0 0.0
    %581 = vmatpush.msra.mxu0 0.0
    %582 = vmatpush.msra.mxu0 0.0
    %583 = vmatpush.msra.mxu0 0.0
    %584 = vmatpush.msra.mxu0 %v336
    %585 = vmatpush.msra.mxu0 %v334
    %586 = vmatpush.msra.mxu0 %v332
    %587 = vmatpush.msra.mxu0 %v330
    %588 = vmatpush.msra.mxu0 %v328
    %589 = vmatpush.msra.mxu0 %v326
    %590 = vmatpush.msra.mxu0 %v324
    %591 = vmatpush.msra.mxu0 %v322
    %592 = vmatmul.f32.gmra.mxu0 %v554
    %v593 = vpop.f32.mrf.mxu0
    %v594 = vadd.f32 0.0, %v593
    %595 = vdwg.mxu0
    %v596 = vadd.f32 %v204, %v574
    %v597 = vadd.f32 %v227, %v594
    %v598 = vxor.u32 %v596, 2147483648
    %v599 = vxor.u32 %v597, 2147483648
    %v600 = vmul.f32 %v598, 1.442695
    %v601 = vpow.pop %v600
    %v602 = vmul.f32 %v599, 1.442695
    %v603 = vpow.pop %v602
    %v604 = vadd.f32 %v601, 1.0
    %v605 = vadd.f32 %v603, 1.0
    %v606 = vrcp.pop %v604
    %v607 = vmul.f32 %v604, %v606
    %v608 = vsub.f32 1.0, %v607
    %v609 = vmul.f32 %v606, %v608
    %v610 = vadd.f32 %v606, %v609
    %vm611 = vweird.f32 %v604
    %vm612 = vweird.f32 %v606
    %vm613 = vmor %vm611, %vm612
    %v614 = vsel %vm613, %v606, %v610
    %v615 = vand.u32 2147483647, %v604
    %vm616 = vcmp.eq.f32.partialorder %v615, 8.507059e+37
    %v617 = vand.u32 %v604, 2147483648
    %v618 = vor.u32 1.1754944e-38, %v617
    %v619 = vsel %vm616, %v618, %v614
    %v620 = vmul.f32 1.0, %v619
    %v621 = vrcp.pop %v605
    %v622 = vmul.f32 %v605, %v621
    %v623 = vsub.f32 1.0, %v622
    %v624 = vmul.f32 %v621, %v623
    %v625 = vadd.f32 %v621, %v624
    %vm626 = vweird.f32 %v605
    %vm627 = vweird.f32 %v621
    %vm628 = vmor %vm626, %vm627
    %v629 = vsel %vm628, %v621, %v625
    %v630 = vand.u32 2147483647, %v605
    %vm631 = vcmp.eq.f32.partialorder %v630, 8.507059e+37
    %v632 = vand.u32 %v605, 2147483648
    %v633 = vor.u32 1.1754944e-38, %v632
    %v634 = vsel %vm631, %v633, %v629
    %v635 = vmul.f32 1.0, %v634
    %v636 = vtanh.pop %v597
    %v638 = vrot.slane %v547, 2
    %v640 = vmul.f32 %v620, %v638
    %v641 = vmul.f32 %v620, %v636
    %643 = vrot.lane.b32.xlu0 %v641, 64
    %v644 = vpop.permute.xlu0 %643
    %v646 = vadd.f32 %v640, %v644
    %v647 = vtanh.pop %v646
    %v648 = vmul.f32 %v635, %v647
    %650 = vrot.lane.b32.xlu0 %v648, 64
    %v651 = vpop.permute.xlu0 %650
    %v652 = vsel %vm341, %v651, 0
    %654 = vmatpush.msra.mxu0 0.0
    %655 = vmatpush.msra.mxu0 0.0
    %656 = vmatpush.msra.mxu0 0.0
    %657 = vmatpush.msra.mxu0 0.0
    %658 = vmatpush.msra.mxu0 0.0
    %659 = vmatpush.msra.mxu0 0.0
    %660 = vmatpush.msra.mxu0 0.0
    %661 = vmatpush.msra.mxu0 0.0
    %662 = vmatpush.msra.mxu0 %v335
    %663 = vmatpush.msra.mxu0 %v333
    %664 = vmatpush.msra.mxu0 %v331
    %665 = vmatpush.msra.mxu0 %v329
    %666 = vmatpush.msra.mxu0 %v327
    %667 = vmatpush.msra.mxu0 %v325
    %668 = vmatpush.msra.mxu0 %v323
    %669 = vmatpush.msra.mxu0 %v321
    %670 = vmatmul.f32.gmra.mxu0 %v652
    %v671 = vpop.f32.mrf.mxu0
    %v672 = vadd.f32 0.0, %v671
    %673 = vdwg.mxu0
    %674 = vmatpush.msra.mxu0 0.0
    %675 = vmatpush.msra.mxu0 0.0
    %676 = vmatpush.msra.mxu0 0.0
    %677 = vmatpush.msra.mxu0 0.0
    %678 = vmatpush.msra.mxu0 0.0
    %679 = vmatpush.msra.mxu0 0.0
    %680 = vmatpush.msra.mxu0 0.0
    %681 = vmatpush.msra.mxu0 0.0
    %682 = vmatpush.msra.mxu0 %v336
    %683 = vmatpush.msra.mxu0 %v334
    %684 = vmatpush.msra.mxu0 %v332
    %685 = vmatpush.msra.mxu0 %v330
    %686 = vmatpush.msra.mxu0 %v328
    %687 = vmatpush.msra.mxu0 %v326
    %688 = vmatpush.msra.mxu0 %v324
    %689 = vmatpush.msra.mxu0 %v322
    %690 = vmatmul.f32.gmra.mxu0 %v652
    %v691 = vpop.f32.mrf.mxu0
    %v692 = vadd.f32 0.0, %v691
    %693 = vdwg.mxu0
    %v696 = vrot.slane %v672, 2
    %v697 = vrot.slane %v692, 2
    %v700 = vadd.f32 %v201, %v696
    %v701 = vadd.f32 %v224, %v697
    %v702 = vxor.u32 %v700, 2147483648
    %v703 = vxor.u32 %v701, 2147483648
    %v704 = vmul.f32 %v702, 1.442695
    %v705 = vpow.pop %v704
    %v706 = vmul.f32 %v703, 1.442695
    %v707 = vpow.pop %v706
    %v708 = vadd.f32 %v705, 1.0
    %v709 = vadd.f32 %v707, 1.0
    %v710 = vrcp.pop %v708
    %v711 = vmul.f32 %v708, %v710
    %v712 = vsub.f32 1.0, %v711
    %v713 = vmul.f32 %v710, %v712
    %v714 = vadd.f32 %v710, %v713
    %vm715 = vweird.f32 %v708
    %vm716 = vweird.f32 %v710
    %vm717 = vmor %vm715, %vm716
    %v718 = vsel %vm717, %v710, %v714
    %v719 = vand.u32 2147483647, %v708
    %vm720 = vcmp.eq.f32.partialorder %v719, 8.507059e+37
    %v721 = vand.u32 %v708, 2147483648
    %v722 = vor.u32 1.1754944e-38, %v721
    %v723 = vsel %vm720, %v722, %v718
    %v724 = vmul.f32 1.0, %v723
    %v725 = vrcp.pop %v709
    %v726 = vmul.f32 %v709, %v725
    %v727 = vsub.f32 1.0, %v726
    %v728 = vmul.f32 %v725, %v727
    %v729 = vadd.f32 %v725, %v728
    %vm730 = vweird.f32 %v709
    %vm731 = vweird.f32 %v725
    %vm732 = vmor %vm730, %vm731
    %v733 = vsel %vm732, %v725, %v729
    %v734 = vand.u32 2147483647, %v709
    %vm735 = vcmp.eq.f32.partialorder %v734, 8.507059e+37
    %v736 = vand.u32 %v709, 2147483648
    %v737 = vor.u32 1.1754944e-38, %v736
    %v738 = vsel %vm735, %v737, %v733
    %v739 = vmul.f32 1.0, %v738
    %v740 = vtanh.pop %v701
    %v742 = vrot.slane %v646, 2
    %v744 = vmul.f32 %v724, %v742
    %v745 = vmul.f32 %v724, %v740
    %747 = vrot.lane.b32.xlu0 %v745, 64
    %v748 = vpop.permute.xlu0 %747
    %v750 = vadd.f32 %v744, %v748
    %v751 = vtanh.pop %v750
    %v752 = vmul.f32 %v739, %v751
    %v754 = vrot.slane %v752, 6
    %755 = vrot.lane.b32.xlu0 %v754, 64
    %v756 = vpop.permute.xlu0 %755
    %v757 = vsel %vm341, %v756, 0
    %759 = vmatpush.msra.mxu0 0.0
    %760 = vmatpush.msra.mxu0 0.0
    %761 = vmatpush.msra.mxu0 0.0
    %762 = vmatpush.msra.mxu0 0.0
    %763 = vmatpush.msra.mxu0 0.0
    %764 = vmatpush.msra.mxu0 0.0
    %765 = vmatpush.msra.mxu0 0.0
    %766 = vmatpush.msra.mxu0 0.0
    %767 = vmatpush.msra.mxu0 %v335
    %768 = vmatpush.msra.mxu0 %v333
    %769 = vmatpush.msra.mxu0 %v331
    %770 = vmatpush.msra.mxu0 %v329
    %771 = vmatpush.msra.mxu0 %v327
    %772 = vmatpush.msra.mxu0 %v325
    %773 = vmatpush.msra.mxu0 %v323
    %774 = vmatpush.msra.mxu0 %v321
    %775 = vmatmul.f32.gmra.mxu0 %v757
    %v776 = vpop.f32.mrf.mxu0
    %v777 = vadd.f32 0.0, %v776
    %778 = vdwg.mxu0
    %779 = vmatpush.msra.mxu0 0.0
    %780 = vmatpush.msra.mxu0 0.0
    %781 = vmatpush.msra.mxu0 0.0
    %782 = vmatpush.msra.mxu0 0.0
    %783 = vmatpush.msra.mxu0 0.0
    %784 = vmatpush.msra.mxu0 0.0
    %785 = vmatpush.msra.mxu0 0.0
    %786 = vmatpush.msra.mxu0 0.0
    %787 = vmatpush.msra.mxu0 %v336
    %788 = vmatpush.msra.mxu0 %v334
    %789 = vmatpush.msra.mxu0 %v332
    %790 = vmatpush.msra.mxu0 %v330
    %791 = vmatpush.msra.mxu0 %v328
    %792 = vmatpush.msra.mxu0 %v326
    %793 = vmatpush.msra.mxu0 %v324
    %794 = vmatpush.msra.mxu0 %v322
    %795 = vmatmul.f32.gmra.mxu0 %v757
    %v796 = vpop.f32.mrf.mxu0
    %v797 = vadd.f32 0.0, %v796
    %798 = vdwg.mxu0
    %v801 = vrot.slane %v777, 4
    %v802 = vrot.slane %v797, 4
    %v805 = vadd.f32 %v201, %v801
    %v806 = vadd.f32 %v224, %v802
    %v807 = vxor.u32 %v805, 2147483648
    %v808 = vxor.u32 %v806, 2147483648
    %v809 = vmul.f32 %v807, 1.442695
    %v810 = vpow.pop %v809
    %v811 = vmul.f32 %v808, 1.442695
    %v812 = vpow.pop %v811
    %v813 = vadd.f32 %v810, 1.0
    %v814 = vadd.f32 %v812, 1.0
    %v815 = vrcp.pop %v813
    %v816 = vmul.f32 %v813, %v815
    %v817 = vsub.f32 1.0, %v816
    %v818 = vmul.f32 %v815, %v817
    %v819 = vadd.f32 %v815, %v818
    %vm820 = vweird.f32 %v813
    %vm821 = vweird.f32 %v815
    %vm822 = vmor %vm820, %vm821
    %v823 = vsel %vm822, %v815, %v819
    %v824 = vand.u32 2147483647, %v813
    %vm825 = vcmp.eq.f32.partialorder %v824, 8.507059e+37
    %v826 = vand.u32 %v813, 2147483648
    %v827 = vor.u32 1.1754944e-38, %v826
    %v828 = vsel %vm825, %v827, %v823
    %v829 = vmul.f32 1.0, %v828
    %v830 = vrcp.pop %v814
    %v831 = vmul.f32 %v814, %v830
    %v832 = vsub.f32 1.0, %v831
    %v833 = vmul.f32 %v830, %v832
    %v834 = vadd.f32 %v830, %v833
    %vm835 = vweird.f32 %v814
    %vm836 = vweird.f32 %v830
    %vm837 = vmor %vm835, %vm836
    %v838 = vsel %vm837, %v830, %v834
    %v839 = vand.u32 2147483647, %v814
    %vm840 = vcmp.eq.f32.partialorder %v839, 8.507059e+37
    %v841 = vand.u32 %v814, 2147483648
    %v842 = vor.u32 1.1754944e-38, %v841
    %v843 = vsel %vm840, %v842, %v838
    %v844 = vmul.f32 1.0, %v843
    %v845 = vtanh.pop %v806
    %v847 = vrot.slane %v750, 2
    %v849 = vmul.f32 %v829, %v847
    %v850 = vmul.f32 %v829, %v845
    %852 = vrot.lane.b32.xlu0 %v850, 64
    %v853 = vpop.permute.xlu0 %852
    %v855 = vadd.f32 %v849, %v853
    %v856 = vtanh.pop %v855
    %v857 = vmul.f32 %v844, %v856
    %v859 = vrot.slane %v857, 4
    %860 = vrot.lane.b32.xlu0 %v859, 64
    %v861 = vpop.permute.xlu0 %860
    %v862 = vsel %vm341, %v861, 0
    %864 = vmatpush.msra.mxu0 0.0
    %865 = vmatpush.msra.mxu0 0.0
    %866 = vmatpush.msra.mxu0 0.0
    %867 = vmatpush.msra.mxu0 0.0
    %868 = vmatpush.msra.mxu0 0.0
    %869 = vmatpush.msra.mxu0 0.0
    %870 = vmatpush.msra.mxu0 0.0
    %871 = vmatpush.msra.mxu0 0.0
    %872 = vmatpush.msra.mxu0 %v335
    %873 = vmatpush.msra.mxu0 %v333
    %874 = vmatpush.msra.mxu0 %v331
    %875 = vmatpush.msra.mxu0 %v329
    %876 = vmatpush.msra.mxu0 %v327
    %877 = vmatpush.msra.mxu0 %v325
    %878 = vmatpush.msra.mxu0 %v323
    %879 = vmatpush.msra.mxu0 %v321
    %880 = vmatmul.f32.gmra.mxu0 %v862
    %v881 = vpop.f32.mrf.mxu0
    %v882 = vadd.f32 0.0, %v881
    %883 = vdwg.mxu0
    %884 = vmatpush.msra.mxu0 0.0
    %885 = vmatpush.msra.mxu0 0.0
    %886 = vmatpush.msra.mxu0 0.0
    %887 = vmatpush.msra.mxu0 0.0
    %888 = vmatpush.msra.mxu0 0.0
    %889 = vmatpush.msra.mxu0 0.0
    %890 = vmatpush.msra.mxu0 0.0
    %891 = vmatpush.msra.mxu0 0.0
    %892 = vmatpush.msra.mxu0 %v336
    %893 = vmatpush.msra.mxu0 %v334
    %894 = vmatpush.msra.mxu0 %v332
    %895 = vmatpush.msra.mxu0 %v330
    %896 = vmatpush.msra.mxu0 %v328
    %897 = vmatpush.msra.mxu0 %v326
    %898 = vmatpush.msra.mxu0 %v324
    %899 = vmatpush.msra.mxu0 %v322
    %900 = vmatmul.f32.gmra.mxu0 %v862
    %v901 = vpop.f32.mrf.mxu0
    %v902 = vadd.f32 0.0, %v901
    %903 = vdwg.mxu0
    %v906 = vrot.slane %v882, 6
    %v907 = vrot.slane %v902, 6
    %v910 = vadd.f32 %v201, %v906
    %v911 = vadd.f32 %v224, %v907
    %v912 = vxor.u32 %v910, 2147483648
    %v913 = vxor.u32 %v911, 2147483648
    %v914 = vmul.f32 %v912, 1.442695
    %v915 = vpow.pop %v914
    %v916 = vmul.f32 %v913, 1.442695
    %v917 = vpow.pop %v916
    %v918 = vadd.f32 %v915, 1.0
    %v919 = vadd.f32 %v917, 1.0
    %v920 = vrcp.pop %v918
    %v921 = vmul.f32 %v918, %v920
    %v922 = vsub.f32 1.0, %v921
    %v923 = vmul.f32 %v920, %v922
    %v924 = vadd.f32 %v920, %v923
    %vm925 = vweird.f32 %v918
    %vm926 = vweird.f32 %v920
    %vm927 = vmor %vm925, %vm926
    %v928 = vsel %vm927, %v920, %v924
    %v929 = vand.u32 2147483647, %v918
    %vm930 = vcmp.eq.f32.partialorder %v929, 8.507059e+37
    %v931 = vand.u32 %v918, 2147483648
    %v932 = vor.u32 1.1754944e-38, %v931
    %v933 = vsel %vm930, %v932, %v928
    %v934 = vmul.f32 1.0, %v933
    %v935 = vrcp.pop %v919
    %v936 = vmul.f32 %v919, %v935
    %v937 = vsub.f32 1.0, %v936
    %v938 = vmul.f32 %v935, %v937
    %v939 = vadd.f32 %v935, %v938
    %vm940 = vweird.f32 %v919
    %vm941 = vweird.f32 %v935
    %vm942 = vmor %vm940, %vm941
    %v943 = vsel %vm942, %v935, %v939
    %v944 = vand.u32 2147483647, %v919
    %vm945 = vcmp.eq.f32.partialorder %v944, 8.507059e+37
    %v946 = vand.u32 %v919, 2147483648
    %v947 = vor.u32 1.1754944e-38, %v946
    %v948 = vsel %vm945, %v947, %v943
    %v949 = vmul.f32 1.0, %v948
    %v950 = vtanh.pop %v911
    %v952 = vrot.slane %v855, 2
    %v954 = vmul.f32 %v934, %v952
    %v955 = vmul.f32 %v934, %v950
    %957 = vrot.lane.b32.xlu0 %v955, 64
    %v958 = vpop.permute.xlu0 %957
    %v960 = vadd.f32 %v954, %v958
    %v961 = vtanh.pop %v960
    %v962 = vmul.f32 %v949, %v961
    %v964 = vrot.slane %v962, 2
    %965 = vrot.lane.b32.xlu0 %v964, 64
    %v966 = vpop.permute.xlu0 %965
    %v967 = vsel %vm341, %v966, 0
    %969 = vmatpush.msra.mxu0 0.0
    %970 = vmatpush.msra.mxu0 0.0
    %971 = vmatpush.msra.mxu0 0.0
    %972 = vmatpush.msra.mxu0 0.0
    %973 = vmatpush.msra.mxu0 0.0
    %974 = vmatpush.msra.mxu0 0.0
    %975 = vmatpush.msra.mxu0 0.0
    %976 = vmatpush.msra.mxu0 0.0
    %977 = vmatpush.msra.mxu0 %v335
    %978 = vmatpush.msra.mxu0 %v333
    %979 = vmatpush.msra.mxu0 %v331
    %980 = vmatpush.msra.mxu0 %v329
    %981 = vmatpush.msra.mxu0 %v327
    %982 = vmatpush.msra.mxu0 %v325
    %983 = vmatpush.msra.mxu0 %v323
    %984 = vmatpush.msra.mxu0 %v321
    %985 = vmatmul.f32.gmra.mxu0 %v967
    %v986 = vpop.f32.mrf.mxu0
    %v987 = vadd.f32 0.0, %v986
    %988 = vdwg.mxu0
    %989 = vmatpush.msra.mxu0 0.0
    %990 = vmatpush.msra.mxu0 0.0
    %991 = vmatpush.msra.mxu0 0.0
    %992 = vmatpush.msra.mxu0 0.0
    %993 = vmatpush.msra.mxu0 0.0
    %994 = vmatpush.msra.mxu0 0.0
    %995 = vmatpush.msra.mxu0 0.0
    %996 = vmatpush.msra.mxu0 0.0
    %997 = vmatpush.msra.mxu0 %v336
    %998 = vmatpush.msra.mxu0 %v334
    %999 = vmatpush.msra.mxu0 %v332
    %1000 = vmatpush.msra.mxu0 %v330
    %1001 = vmatpush.msra.mxu0 %v328
    %1002 = vmatpush.msra.mxu0 %v326
    %1003 = vmatpush.msra.mxu0 %v324
    %1004 = vmatpush.msra.mxu0 %v322
    %1005 = vmatmul.f32.gmra.mxu0 %v967
    %v1006 = vpop.f32.mrf.mxu0
    %v1007 = vadd.f32 0.0, %v1006
    %1008 = vdwg.mxu0
    %v1009 = vadd.f32 %v201, %v987
    %v1010 = vadd.f32 %v224, %v1007
    %v1011 = vxor.u32 %v1009, 2147483648
    %v1012 = vxor.u32 %v1010, 2147483648
    %v1013 = vmul.f32 %v1011, 1.442695
    %v1014 = vpow.pop %v1013
    %v1015 = vmul.f32 %v1012, 1.442695
    %v1016 = vpow.pop %v1015
    %v1017 = vadd.f32 %v1014, 1.0
    %v1018 = vadd.f32 %v1016, 1.0
    %v1019 = vrcp.pop %v1017
    %v1020 = vmul.f32 %v1017, %v1019
    %v1021 = vsub.f32 1.0, %v1020
    %v1022 = vmul.f32 %v1019, %v1021
    %v1023 = vadd.f32 %v1019, %v1022
    %vm1024 = vweird.f32 %v1017
    %vm1025 = vweird.f32 %v1019
    %vm1026 = vmor %vm1024, %vm1025
    %v1027 = vsel %vm1026, %v1019, %v1023
    %v1028 = vand.u32 2147483647, %v1017
    %vm1029 = vcmp.eq.f32.partialorder %v1028, 8.507059e+37
    %v1030 = vand.u32 %v1017, 2147483648
    %v1031 = vor.u32 1.1754944e-38, %v1030
    %v1032 = vsel %vm1029, %v1031, %v1027
    %v1033 = vmul.f32 1.0, %v1032
    %v1034 = vrcp.pop %v1018
    %v1035 = vmul.f32 %v1018, %v1034
    %v1036 = vsub.f32 1.0, %v1035
    %v1037 = vmul.f32 %v1034, %v1036
    %v1038 = vadd.f32 %v1034, %v1037
    %vm1039 = vweird.f32 %v1018
    %vm1040 = vweird.f32 %v1034
    %vm1041 = vmor %vm1039, %vm1040
    %v1042 = vsel %vm1041, %v1034, %v1038
    %v1043 = vand.u32 2147483647, %v1018
    %vm1044 = vcmp.eq.f32.partialorder %v1043, 8.507059e+37
    %v1045 = vand.u32 %v1018, 2147483648
    %v1046 = vor.u32 1.1754944e-38, %v1045
    %v1047 = vsel %vm1044, %v1046, %v1042
    %v1048 = vmul.f32 1.0, %v1047
    %v1049 = vtanh.pop %v1010
    %v1051 = vrot.slane %v960, 2
    %v1053 = vmul.f32 %v1033, %v1051
    %v1054 = vmul.f32 %v1033, %v1049
    %1056 = vrot.lane.b32.xlu0 %v1054, 64
    %v1057 = vpop.permute.xlu0 %1056
    %v1059 = vadd.f32 %v1053, %v1057
    %v1060 = vtanh.pop %v1059
    %v1061 = vmul.f32 %v1048, %v1060
    %1063 = vrot.lane.b32.xlu0 %v274, 64
    %v1064 = vpop.permute.xlu0 %1063
    %v1066 = vsel %vm341, %v1064, %v1061
    %v1067 = vld [vmem:[%s1] sm:$0xff]
    %v1068 = vld [vmem:[%s1 + $0x8] sm:$0xff]
    %v1069 = vld [vmem:[#allocation6] sm:$0xff]
    %v1070 = vld [vmem:[#allocation6 + $0x8] sm:$0xff]
    %v1071 = vld [vmem:[#allocation6 + $0x10] sm:$0xff]
    %v1072 = vld [vmem:[#allocation6 + $0x18] sm:$0xff]
    %v1073 = vld [vmem:[#allocation6 + $0x20] sm:$0xff]
    %v1074 = vld [vmem:[#allocation6 + $0x28] sm:$0xff]
    %v1075 = vld [vmem:[#allocation6 + $0x30] sm:$0xff]
    %v1076 = vld [vmem:[#allocation6 + $0x38] sm:$0xff]
    %v1077 = vld [vmem:[#allocation6 + $0x40] sm:$0xff]
    %v1078 = vld [vmem:[#allocation6 + $0x48] sm:$0xff]
    %v1079 = vld [vmem:[#allocation6 + $0x50] sm:$0xff]
    %v1080 = vld [vmem:[#allocation6 + $0x58] sm:$0xff]
    %v1081 = vld [vmem:[#allocation6 + $0x60] sm:$0xff]
    %v1082 = vld [vmem:[#allocation6 + $0x68] sm:$0xff]
    %v1083 = vld [vmem:[#allocation6 + $0x70] sm:$0xff]
    %v1084 = vld [vmem:[#allocation6 + $0x78] sm:$0xff]
    %v1085 = vld [vmem:[%s6] sm:$0xf]
    %v1087 = vperm.slane %v1085, 0
    %v1088 = vperm.slane %v1085, 1
    %v1089 = vperm.slane %v1085, 2
    %v1090 = vperm.slane %v1085, 3
    %v1096 = vsel %vm132, %v1067, 0
    %v1099 = vsel %vm132, %v1068, 0
    %1101 = vmatpush.msra.mxu0 0.0
    %1102 = vmatpush.msra.mxu0 0.0
    %1103 = vmatpush.msra.mxu0 0.0
    %1104 = vmatpush.msra.mxu0 0.0
    %1105 = vmatpush.msra.mxu0 0.0
    %1106 = vmatpush.msra.mxu0 0.0
    %1107 = vmatpush.msra.mxu0 0.0
    %1108 = vmatpush.msra.mxu0 0.0
    %1109 = vmatpush.msra.mxu0 0.0
    %1110 = vmatpush.msra.mxu0 0.0
    %1111 = vmatpush.msra.mxu0 0.0
    %1112 = vmatpush.msra.mxu0 0.0
    %1113 = vmatpush.msra.mxu0 %v1081
    %1114 = vmatpush.msra.mxu0 %v1077
    %1115 = vmatpush.msra.mxu0 %v1073
    %1116 = vmatpush.msra.mxu0 %v1069
    %1117 = vmatmul.f32.gmra.mxu0 %v1096
    %v1118 = vpop.f32.mrf.mxu0
    %v1119 = vadd.f32 %v1087, %v1118
    %1120 = vmatmul.f32.gmra.mxu0 %v1099
    %v1121 = vpop.f32.mrf.mxu0
    %1122 = vdwg.mxu0
    %1123 = vmatpush.msra.mxu0 0.0
    %1124 = vmatpush.msra.mxu0 0.0
    %1125 = vmatpush.msra.mxu0 0.0
    %1126 = vmatpush.msra.mxu0 0.0
    %1127 = vmatpush.msra.mxu0 0.0
    %1128 = vmatpush.msra.mxu0 0.0
    %1129 = vmatpush.msra.mxu0 0.0
    %1130 = vmatpush.msra.mxu0 0.0
    %1131 = vmatpush.msra.mxu0 0.0
    %1132 = vmatpush.msra.mxu0 0.0
    %1133 = vmatpush.msra.mxu0 0.0
    %1134 = vmatpush.msra.mxu0 0.0
    %1135 = vmatpush.msra.mxu0 %v1082
    %1136 = vmatpush.msra.mxu0 %v1078
    %1137 = vmatpush.msra.mxu0 %v1074
    %1138 = vmatpush.msra.mxu0 %v1070
    %1139 = vmatmul.f32.gmra.mxu0 %v1096
    %v1140 = vpop.f32.mrf.mxu0
    %v1141 = vadd.f32 %v1088, %v1140
    %1142 = vmatmul.f32.gmra.mxu0 %v1099
    %v1143 = vpop.f32.mrf.mxu0
    %1144 = vdwg.mxu0
    %1145 = vmatpush.msra.mxu0 0.0
    %1146 = vmatpush.msra.mxu0 0.0
    %1147 = vmatpush.msra.mxu0 0.0
    %1148 = vmatpush.msra.mxu0 0.0
    %1149 = vmatpush.msra.mxu0 0.0
    %1150 = vmatpush.msra.mxu0 0.0
    %1151 = vmatpush.msra.mxu0 0.0
    %1152 = vmatpush.msra.mxu0 0.0
    %1153 = vmatpush.msra.mxu0 0.0
    %1154 = vmatpush.msra.mxu0 0.0
    %1155 = vmatpush.msra.mxu0 0.0
    %1156 = vmatpush.msra.mxu0 0.0
    %1157 = vmatpush.msra.mxu0 %v1083
    %1158 = vmatpush.msra.mxu0 %v1079
    %1159 = vmatpush.msra.mxu0 %v1075
    %1160 = vmatpush.msra.mxu0 %v1071
    %1161 = vmatmul.f32.gmra.mxu0 %v1096
    %v1162 = vpop.f32.mrf.mxu0
    %v1163 = vadd.f32 %v1089, %v1162
    %1164 = vmatmul.f32.gmra.mxu0 %v1099
    %v1165 = vpop.f32.mrf.mxu0
    %v1166 = vadd.f32 %v1089, %v1165
    %1167 = vdwg.mxu0
    %1168 = vmatpush.msra.mxu0 0.0
    %1169 = vmatpush.msra.mxu0 0.0
    %1170 = vmatpush.msra.mxu0 0.0
    %1171 = vmatpush.msra.mxu0 0.0
    %1172 = vmatpush.msra.mxu0 0.0
    %1173 = vmatpush.msra.mxu0 0.0
    %1174 = vmatpush.msra.mxu0 0.0
    %1175 = vmatpush.msra.mxu0 0.0
    %1176 = vmatpush.msra.mxu0 0.0
    %1177 = vmatpush.msra.mxu0 0.0
    %1178 = vmatpush.msra.mxu0 0.0
    %1179 = vmatpush.msra.mxu0 0.0
    %1180 = vmatpush.msra.mxu0 %v1084
    %1181 = vmatpush.msra.mxu0 %v1080
    %1182 = vmatpush.msra.mxu0 %v1076
    %1183 = vmatpush.msra.mxu0 %v1072
    %1184 = vmatmul.f32.gmra.mxu0 %v1096
    %v1185 = vpop.f32.mrf.mxu0
    %v1186 = vadd.f32 %v1090, %v1185
    %1187 = vmatmul.f32.gmra.mxu0 %v1099
    %v1188 = vpop.f32.mrf.mxu0
    %v1189 = vadd.f32 %v1090, %v1188
    %1190 = vdwg.mxu0
    %v1191 = vxor.u32 %v1119, 2147483648
    %v1192 = vxor.u32 %v1141, 2147483648
    %v1193 = vmul.f32 %v1191, 1.442695
    %v1194 = vpow.pop %v1193
    %v1195 = vmul.f32 %v1192, 1.442695
    %v1196 = vpow.pop %v1195
    %v1197 = vadd.f32 %v1194, 1.0
    %v1198 = vadd.f32 %v1196, 1.0
    %v1199 = vrcp.pop %v1197
    %v1200 = vmul.f32 %v1197, %v1199
    %v1201 = vsub.f32 1.0, %v1200
    %v1202 = vmul.f32 %v1199, %v1201
    %v1203 = vadd.f32 %v1199, %v1202
    %vm1204 = vweird.f32 %v1197
    %vm1205 = vweird.f32 %v1199
    %vm1206 = vmor %vm1204, %vm1205
    %v1207 = vsel %vm1206, %v1199, %v1203
    %v1208 = vand.u32 2147483647, %v1197
    %vm1209 = vcmp.eq.f32.partialorder %v1208, 8.507059e+37
    %v1210 = vand.u32 %v1197, 2147483648
    %v1211 = vor.u32 1.1754944e-38, %v1210
    %v1212 = vsel %vm1209, %v1211, %v1207
    %v1213 = vmul.f32 1.0, %v1212
    %v1214 = vrcp.pop %v1198
    %v1215 = vmul.f32 %v1198, %v1214
    %v1216 = vsub.f32 1.0, %v1215
    %v1217 = vmul.f32 %v1214, %v1216
    %v1218 = vadd.f32 %v1214, %v1217
    %vm1219 = vweird.f32 %v1198
    %vm1220 = vweird.f32 %v1214
    %vm1221 = vmor %vm1219, %vm1220
    %v1222 = vsel %vm1221, %v1214, %v1218
    %v1223 = vand.u32 2147483647, %v1198
    %vm1224 = vcmp.eq.f32.partialorder %v1223, 8.507059e+37
    %v1225 = vand.u32 %v1198, 2147483648
    %v1226 = vor.u32 1.1754944e-38, %v1225
    %v1227 = vsel %vm1224, %v1226, %v1222
    %v1228 = vmul.f32 1.0, %v1227
    %v1229 = vtanh.pop %v1141
    %v1230 = vmul.f32 %v1213, %v1229
    %v1231 = vtanh.pop %v1230
    %1233 = vrot.lane.b32.xlu0 %v1231, 64
    %v1234 = vpop.permute.xlu0 %1233
    %v1236 = vmul.f32 %v1228, %v1234
    %v1237 = vxor.u32 %v1166, 2147483648
    %v1238 = vxor.u32 %v1189, 2147483648
    %v1239 = vmul.f32 %v1237, 1.442695
    %v1240 = vpow.pop %v1239
    %v1241 = vmul.f32 %v1238, 1.442695
    %v1242 = vpow.pop %v1241
    %v1243 = vadd.f32 %v1240, 1.0
    %v1244 = vadd.f32 %v1242, 1.0
    %v1245 = vrcp.pop %v1243
    %v1246 = vmul.f32 %v1243, %v1245
    %v1247 = vsub.f32 1.0, %v1246
    %v1248 = vmul.f32 %v1245, %v1247
    %v1249 = vadd.f32 %v1245, %v1248
    %vm1250 = vweird.f32 %v1243
    %vm1251 = vweird.f32 %v1245
    %vm1252 = vmor %vm1250, %vm1251
    %v1253 = vsel %vm1252, %v1245, %v1249
    %v1254 = vand.u32 2147483647, %v1243
    %vm1255 = vcmp.eq.f32.partialorder %v1254, 8.507059e+37
    %v1256 = vand.u32 %v1243, 2147483648
    %v1257 = vor.u32 1.1754944e-38, %v1256
    %v1258 = vsel %vm1255, %v1257, %v1253
    %v1259 = vmul.f32 1.0, %v1258
    %v1260 = vrcp.pop %v1244
    %v1261 = vmul.f32 %v1244, %v1260
    %v1262 = vsub.f32 1.0, %v1261
    %v1263 = vmul.f32 %v1260, %v1262
    %v1264 = vadd.f32 %v1260, %v1263
    %vm1265 = vweird.f32 %v1244
    %vm1266 = vweird.f32 %v1260
    %vm1267 = vmor %vm1265, %vm1266
    %v1268 = vsel %vm1267, %v1260, %v1264
    %v1269 = vand.u32 2147483647, %v1244
    %vm1270 = vcmp.eq.f32.partialorder %v1269, 8.507059e+37
    %v1271 = vand.u32 %v1244, 2147483648
    %v1272 = vor.u32 1.1754944e-38, %v1271
    %v1273 = vsel %vm1270, %v1272, %v1268
    %v1274 = vmul.f32 1.0, %v1273
    %v1275 = vtanh.pop %v1189
    %v1276 = vmul.f32 %v1259, %v1275
    %v1277 = vtanh.pop %v1276
    %1279 = vrot.lane.b32.xlu0 %v1277, 64
    %v1280 = vpop.permute.xlu0 %1279
    %v1282 = vmul.f32 %v1274, %v1280
    %v1283 = vld [vmem:[#allocation7] sm:$0xff]
    %v1284 = vld [vmem:[#allocation7 + $0x8] sm:$0xff]
    %v1285 = vld [vmem:[#allocation7 + $0x10] sm:$0xff]
    %v1286 = vld [vmem:[#allocation7 + $0x18] sm:$0xff]
    %v1287 = vld [vmem:[#allocation7 + $0x20] sm:$0xff]
    %v1288 = vld [vmem:[#allocation7 + $0x28] sm:$0xff]
    %v1289 = vld [vmem:[#allocation7 + $0x30] sm:$0xff]
    %v1290 = vld [vmem:[#allocation7 + $0x38] sm:$0xff]
    %v1291 = vld [vmem:[#allocation7 + $0x40] sm:$0xff]
    %v1292 = vld [vmem:[#allocation7 + $0x48] sm:$0xff]
    %v1293 = vld [vmem:[#allocation7 + $0x50] sm:$0xff]
    %v1294 = vld [vmem:[#allocation7 + $0x58] sm:$0xff]
    %v1295 = vld [vmem:[#allocation7 + $0x60] sm:$0xff]
    %v1296 = vld [vmem:[#allocation7 + $0x68] sm:$0xff]
    %v1297 = vld [vmem:[#allocation7 + $0x70] sm:$0xff]
    %v1298 = vld [vmem:[#allocation7 + $0x78] sm:$0xff]
    %v1300 = vrot.slane %v1282, 6
    %1301 = vrot.lane.b32.xlu0 %v1300, 64
    %v1302 = vpop.permute.xlu0 %1301
    %v1303 = vsel %vm341, %v1302, 0
    %1305 = vmatpush.msra.mxu0 0.0
    %1306 = vmatpush.msra.mxu0 0.0
    %1307 = vmatpush.msra.mxu0 0.0
    %1308 = vmatpush.msra.mxu0 0.0
    %1309 = vmatpush.msra.mxu0 0.0
    %1310 = vmatpush.msra.mxu0 0.0
    %1311 = vmatpush.msra.mxu0 0.0
    %1312 = vmatpush.msra.mxu0 0.0
    %1313 = vmatpush.msra.mxu0 %v1297
    %1314 = vmatpush.msra.mxu0 %v1295
    %1315 = vmatpush.msra.mxu0 %v1293
    %1316 = vmatpush.msra.mxu0 %v1291
    %1317 = vmatpush.msra.mxu0 %v1289
    %1318 = vmatpush.msra.mxu0 %v1287
    %1319 = vmatpush.msra.mxu0 %v1285
    %1320 = vmatpush.msra.mxu0 %v1283
    %1321 = vmatmul.f32.gmra.mxu0 %v1303
    %v1322 = vpop.f32.mrf.mxu0
    %v1323 = vadd.f32 0.0, %v1322
    %1324 = vdwg.mxu0
    %1325 = vmatpush.msra.mxu0 0.0
    %1326 = vmatpush.msra.mxu0 0.0
    %1327 = vmatpush.msra.mxu0 0.0
    %1328 = vmatpush.msra.mxu0 0.0
    %1329 = vmatpush.msra.mxu0 0.0
    %1330 = vmatpush.msra.mxu0 0.0
    %1331 = vmatpush.msra.mxu0 0.0
    %1332 = vmatpush.msra.mxu0 0.0
    %1333 = vmatpush.msra.mxu0 %v1298
    %1334 = vmatpush.msra.mxu0 %v1296
    %1335 = vmatpush.msra.mxu0 %v1294
    %1336 = vmatpush.msra.mxu0 %v1292
    %1337 = vmatpush.msra.mxu0 %v1290
    %1338 = vmatpush.msra.mxu0 %v1288
    %1339 = vmatpush.msra.mxu0 %v1286
    %1340 = vmatpush.msra.mxu0 %v1284
    %1341 = vmatmul.f32.gmra.mxu0 %v1303
    %v1342 = vpop.f32.mrf.mxu0
    %v1343 = vadd.f32 0.0, %v1342
    %1344 = vdwg.mxu0
    %v1347 = vrot.slane %v1323, 4
    %v1348 = vrot.slane %v1343, 4
    %v1351 = vadd.f32 %v1166, %v1347
    %v1352 = vadd.f32 %v1189, %v1348
    %v1353 = vxor.u32 %v1351, 2147483648
    %v1354 = vxor.u32 %v1352, 2147483648
    %v1355 = vmul.f32 %v1353, 1.442695
    %v1356 = vpow.pop %v1355
    %v1357 = vmul.f32 %v1354, 1.442695
    %v1358 = vpow.pop %v1357
    %v1359 = vadd.f32 %v1356, 1.0
    %v1360 = vadd.f32 %v1358, 1.0
    %v1361 = vrcp.pop %v1359
    %v1362 = vmul.f32 %v1359, %v1361
    %v1363 = vsub.f32 1.0, %v1362
    %v1364 = vmul.f32 %v1361, %v1363
    %v1365 = vadd.f32 %v1361, %v1364
    %vm1366 = vweird.f32 %v1359
    %vm1367 = vweird.f32 %v1361
    %vm1368 = vmor %vm1366, %vm1367
    %v1369 = vsel %vm1368, %v1361, %v1365
    %v1370 = vand.u32 2147483647, %v1359
    %vm1371 = vcmp.eq.f32.partialorder %v1370, 8.507059e+37
    %v1372 = vand.u32 %v1359, 2147483648
    %v1373 = vor.u32 1.1754944e-38, %v1372
    %v1374 = vsel %vm1371, %v1373, %v1369
    %v1375 = vmul.f32 1.0, %v1374
    %v1376 = vrcp.pop %v1360
    %v1377 = vmul.f32 %v1360, %v1376
    %v1378 = vsub.f32 1.0, %v1377
    %v1379 = vmul.f32 %v1376, %v1378
    %v1380 = vadd.f32 %v1376, %v1379
    %vm1381 = vweird.f32 %v1360
    %vm1382 = vweird.f32 %v1376
    %vm1383 = vmor %vm1381, %vm1382
    %v1384 = vsel %vm1383, %v1376, %v1380
    %v1385 = vand.u32 2147483647, %v1360
    %vm1386 = vcmp.eq.f32.partialorder %v1385, 8.507059e+37
    %v1387 = vand.u32 %v1360, 2147483648
    %v1388 = vor.u32 1.1754944e-38, %v1387
    %v1389 = vsel %vm1386, %v1388, %v1384
    %v1390 = vmul.f32 1.0, %v1389
    %v1391 = vtanh.pop %v1352
    %v1393 = vrot.slane %v1276, 2
    %1394 = vrot.lane.b32.xlu0 %v1393, 64
    %v1395 = vpop.permute.xlu0 %1394
    %v1397 = vmul.f32 %v1375, %v1395
    %v1398 = vmul.f32 %v1375, %v1391
    %1400 = vrot.lane.b32.xlu0 %v1398, 64
    %v1401 = vpop.permute.xlu0 %1400
    %v1403 = vadd.f32 %v1397, %v1401
    %v1404 = vtanh.pop %v1403
    %v1405 = vmul.f32 %v1390, %v1404
    %v1407 = vrot.slane %v1405, 4
    %1408 = vrot.lane.b32.xlu0 %v1407, 64
    %v1409 = vpop.permute.xlu0 %1408
    %v1410 = vsel %vm341, %v1409, 0
    %1412 = vmatpush.msra.mxu0 0.0
    %1413 = vmatpush.msra.mxu0 0.0
    %1414 = vmatpush.msra.mxu0 0.0
    %1415 = vmatpush.msra.mxu0 0.0
    %1416 = vmatpush.msra.mxu0 0.0
    %1417 = vmatpush.msra.mxu0 0.0
    %1418 = vmatpush.msra.mxu0 0.0
    %1419 = vmatpush.msra.mxu0 0.0
    %1420 = vmatpush.msra.mxu0 %v1297
    %1421 = vmatpush.msra.mxu0 %v1295
    %1422 = vmatpush.msra.mxu0 %v1293
    %1423 = vmatpush.msra.mxu0 %v1291
    %1424 = vmatpush.msra.mxu0 %v1289
    %1425 = vmatpush.msra.mxu0 %v1287
    %1426 = vmatpush.msra.mxu0 %v1285
    %1427 = vmatpush.msra.mxu0 %v1283
    %1428 = vmatmul.f32.gmra.mxu0 %v1410
    %v1429 = vpop.f32.mrf.mxu0
    %v1430 = vadd.f32 0.0, %v1429
    %1431 = vdwg.mxu0
    %1432 = vmatpush.msra.mxu0 0.0
    %1433 = vmatpush.msra.mxu0 0.0
    %1434 = vmatpush.msra.mxu0 0.0
    %1435 = vmatpush.msra.mxu0 0.0
    %1436 = vmatpush.msra.mxu0 0.0
    %1437 = vmatpush.msra.mxu0 0.0
    %1438 = vmatpush.msra.mxu0 0.0
    %1439 = vmatpush.msra.mxu0 0.0
    %1440 = vmatpush.msra.mxu0 %v1298
    %1441 = vmatpush.msra.mxu0 %v1296
    %1442 = vmatpush.msra.mxu0 %v1294
    %1443 = vmatpush.msra.mxu0 %v1292
    %1444 = vmatpush.msra.mxu0 %v1290
    %1445 = vmatpush.msra.mxu0 %v1288
    %1446 = vmatpush.msra.mxu0 %v1286
    %1447 = vmatpush.msra.mxu0 %v1284
    %1448 = vmatmul.f32.gmra.mxu0 %v1410
    %v1449 = vpop.f32.mrf.mxu0
    %v1450 = vadd.f32 0.0, %v1449
    %1451 = vdwg.mxu0
    %v1454 = vrot.slane %v1430, 6
    %v1455 = vrot.slane %v1450, 6
    %v1458 = vadd.f32 %v1166, %v1454
    %v1459 = vadd.f32 %v1189, %v1455
    %v1460 = vxor.u32 %v1458, 2147483648
    %v1461 = vxor.u32 %v1459, 2147483648
    %v1462 = vmul.f32 %v1460, 1.442695
    %v1463 = vpow.pop %v1462
    %v1464 = vmul.f32 %v1461, 1.442695
    %v1465 = vpow.pop %v1464
    %v1466 = vadd.f32 %v1463, 1.0
    %v1467 = vadd.f32 %v1465, 1.0
    %v1468 = vrcp.pop %v1466
    %v1469 = vmul.f32 %v1466, %v1468
    %v1470 = vsub.f32 1.0, %v1469
    %v1471 = vmul.f32 %v1468, %v1470
    %v1472 = vadd.f32 %v1468, %v1471
    %vm1473 = vweird.f32 %v1466
    %vm1474 = vweird.f32 %v1468
    %vm1475 = vmor %vm1473, %vm1474
    %v1476 = vsel %vm1475, %v1468, %v1472
    %v1477 = vand.u32 2147483647, %v1466
    %vm1478 = vcmp.eq.f32.partialorder %v1477, 8.507059e+37
    %v1479 = vand.u32 %v1466, 2147483648
    %v1480 = vor.u32 1.1754944e-38, %v1479
    %v1481 = vsel %vm1478, %v1480, %v1476
    %v1482 = vmul.f32 1.0, %v1481
    %v1483 = vrcp.pop %v1467
    %v1484 = vmul.f32 %v1467, %v1483
    %v1485 = vsub.f32 1.0, %v1484
    %v1486 = vmul.f32 %v1483, %v1485
    %v1487 = vadd.f32 %v1483, %v1486
    %vm1488 = vweird.f32 %v1467
    %vm1489 = vweird.f32 %v1483
    %vm1490 = vmor %vm1488, %vm1489
    %v1491 = vsel %vm1490, %v1483, %v1487
    %v1492 = vand.u32 2147483647, %v1467
    %vm1493 = vcmp.eq.f32.partialorder %v1492, 8.507059e+37
    %v1494 = vand.u32 %v1467, 2147483648
    %v1495 = vor.u32 1.1754944e-38, %v1494
    %v1496 = vsel %vm1493, %v1495, %v1491
    %v1497 = vmul.f32 1.0, %v1496
    %v1498 = vtanh.pop %v1459
    %v1500 = vrot.slane %v1403, 2
    %v1502 = vmul.f32 %v1482, %v1500
    %v1503 = vmul.f32 %v1482, %v1498
    %1505 = vrot.lane.b32.xlu0 %v1503, 64
    %v1506 = vpop.permute.xlu0 %1505
    %v1508 = vadd.f32 %v1502, %v1506
    %v1509 = vtanh.pop %v1508
    %v1510 = vmul.f32 %v1497, %v1509
    %v1512 = vrot.slane %v1510, 2
    %1513 = vrot.lane.b32.xlu0 %v1512, 64
    %v1514 = vpop.permute.xlu0 %1513
    %v1515 = vsel %vm341, %v1514, 0
    %1517 = vmatpush.msra.mxu0 0.0
    %1518 = vmatpush.msra.mxu0 0.0
    %1519 = vmatpush.msra.mxu0 0.0
    %1520 = vmatpush.msra.mxu0 0.0
    %1521 = vmatpush.msra.mxu0 0.0
    %1522 = vmatpush.msra.mxu0 0.0
    %1523 = vmatpush.msra.mxu0 0.0
    %1524 = vmatpush.msra.mxu0 0.0
    %1525 = vmatpush.msra.mxu0 %v1297
    %1526 = vmatpush.msra.mxu0 %v1295
    %1527 = vmatpush.msra.mxu0 %v1293
    %1528 = vmatpush.msra.mxu0 %v1291
    %1529 = vmatpush.msra.mxu0 %v1289
    %1530 = vmatpush.msra.mxu0 %v1287
    %1531 = vmatpush.msra.mxu0 %v1285
    %1532 = vmatpush.msra.mxu0 %v1283
    %1533 = vmatmul.f32.gmra.mxu0 %v1515
    %v1534 = vpop.f32.mrf.mxu0
    %v1535 = vadd.f32 0.0, %v1534
    %1536 = vdwg.mxu0
    %1537 = vmatpush.msra.mxu0 0.0
    %1538 = vmatpush.msra.mxu0 0.0
    %1539 = vmatpush.msra.mxu0 0.0
    %1540 = vmatpush.msra.mxu0 0.0
    %1541 = vmatpush.msra.mxu0 0.0
    %1542 = vmatpush.msra.mxu0 0.0
    %1543 = vmatpush.msra.mxu0 0.0
    %1544 = vmatpush.msra.mxu0 0.0
    %1545 = vmatpush.msra.mxu0 %v1298
    %1546 = vmatpush.msra.mxu0 %v1296
    %1547 = vmatpush.msra.mxu0 %v1294
    %1548 = vmatpush.msra.mxu0 %v1292
    %1549 = vmatpush.msra.mxu0 %v1290
    %1550 = vmatpush.msra.mxu0 %v1288
    %1551 = vmatpush.msra.mxu0 %v1286
    %1552 = vmatpush.msra.mxu0 %v1284
    %1553 = vmatmul.f32.gmra.mxu0 %v1515
    %v1554 = vpop.f32.mrf.mxu0
    %v1555 = vadd.f32 0.0, %v1554
    %1556 = vdwg.mxu0
    %v1557 = vadd.f32 %v1166, %v1535
    %v1558 = vadd.f32 %v1189, %v1555
    %v1559 = vxor.u32 %v1557, 2147483648
    %v1560 = vxor.u32 %v1558, 2147483648
    %v1561 = vmul.f32 %v1559, 1.442695
    %v1562 = vpow.pop %v1561
    %v1563 = vmul.f32 %v1560, 1.442695
    %v1564 = vpow.pop %v1563
    %v1565 = vadd.f32 %v1562, 1.0
    %v1566 = vadd.f32 %v1564, 1.0
    %v1567 = vrcp.pop %v1565
    %v1568 = vmul.f32 %v1565, %v1567
    %v1569 = vsub.f32 1.0, %v1568
    %v1570 = vmul.f32 %v1567, %v1569
    %v1571 = vadd.f32 %v1567, %v1570
    %vm1572 = vweird.f32 %v1565
    %vm1573 = vweird.f32 %v1567
    %vm1574 = vmor %vm1572, %vm1573
    %v1575 = vsel %vm1574, %v1567, %v1571
    %v1576 = vand.u32 2147483647, %v1565
    %vm1577 = vcmp.eq.f32.partialorder %v1576, 8.507059e+37
    %v1578 = vand.u32 %v1565, 2147483648
    %v1579 = vor.u32 1.1754944e-38, %v1578
    %v1580 = vsel %vm1577, %v1579, %v1575
    %v1581 = vmul.f32 1.0, %v1580
    %v1582 = vrcp.pop %v1566
    %v1583 = vmul.f32 %v1566, %v1582
    %v1584 = vsub.f32 1.0, %v1583
    %v1585 = vmul.f32 %v1582, %v1584
    %v1586 = vadd.f32 %v1582, %v1585
    %vm1587 = vweird.f32 %v1566
    %vm1588 = vweird.f32 %v1582
    %vm1589 = vmor %vm1587, %vm1588
    %v1590 = vsel %vm1589, %v1582, %v1586
    %v1591 = vand.u32 2147483647, %v1566
    %vm1592 = vcmp.eq.f32.partialorder %v1591, 8.507059e+37
    %v1593 = vand.u32 %v1566, 2147483648
    %v1594 = vor.u32 1.1754944e-38, %v1593
    %v1595 = vsel %vm1592, %v1594, %v1590
    %v1596 = vmul.f32 1.0, %v1595
    %v1597 = vtanh.pop %v1558
    %v1599 = vrot.slane %v1508, 2
    %v1601 = vmul.f32 %v1581, %v1599
    %v1602 = vmul.f32 %v1581, %v1597
    %1604 = vrot.lane.b32.xlu0 %v1602, 64
    %v1605 = vpop.permute.xlu0 %1604
    %v1607 = vadd.f32 %v1601, %v1605
    %v1608 = vtanh.pop %v1607
    %v1609 = vmul.f32 %v1596, %v1608
    %1611 = vrot.lane.b32.xlu0 %v1609, 64
    %v1612 = vpop.permute.xlu0 %1611
    %v1613 = vsel %vm341, %v1612, 0
    %1615 = vmatpush.msra.mxu0 0.0
    %1616 = vmatpush.msra.mxu0 0.0
    %1617 = vmatpush.msra.mxu0 0.0
    %1618 = vmatpush.msra.mxu0 0.0
    %1619 = vmatpush.msra.mxu0 0.0
    %1620 = vmatpush.msra.mxu0 0.0
    %1621 = vmatpush.msra.mxu0 0.0
    %1622 = vmatpush.msra.mxu0 0.0
    %1623 = vmatpush.msra.mxu0 %v1297
    %1624 = vmatpush.msra.mxu0 %v1295
    %1625 = vmatpush.msra.mxu0 %v1293
    %1626 = vmatpush.msra.mxu0 %v1291
    %1627 = vmatpush.msra.mxu0 %v1289
    %1628 = vmatpush.msra.mxu0 %v1287
    %1629 = vmatpush.msra.mxu0 %v1285
    %1630 = vmatpush.msra.mxu0 %v1283
    %1631 = vmatmul.f32.gmra.mxu0 %v1613
    %v1632 = vpop.f32.mrf.mxu0
    %v1633 = vadd.f32 0.0, %v1632
    %1634 = vdwg.mxu0
    %1635 = vmatpush.msra.mxu0 0.0
    %1636 = vmatpush.msra.mxu0 0.0
    %1637 = vmatpush.msra.mxu0 0.0
    %1638 = vmatpush.msra.mxu0 0.0
    %1639 = vmatpush.msra.mxu0 0.0
    %1640 = vmatpush.msra.mxu0 0.0
    %1641 = vmatpush.msra.mxu0 0.0
    %1642 = vmatpush.msra.mxu0 0.0
    %1643 = vmatpush.msra.mxu0 %v1298
    %1644 = vmatpush.msra.mxu0 %v1296
    %1645 = vmatpush.msra.mxu0 %v1294
    %1646 = vmatpush.msra.mxu0 %v1292
    %1647 = vmatpush.msra.mxu0 %v1290
    %1648 = vmatpush.msra.mxu0 %v1288
    %1649 = vmatpush.msra.mxu0 %v1286
    %1650 = vmatpush.msra.mxu0 %v1284
    %1651 = vmatmul.f32.gmra.mxu0 %v1613
    %v1652 = vpop.f32.mrf.mxu0
    %v1653 = vadd.f32 0.0, %v1652
    %1654 = vdwg.mxu0
    %v1657 = vrot.slane %v1633, 2
    %v1658 = vrot.slane %v1653, 2
    %v1661 = vadd.f32 %v1163, %v1657
    %v1662 = vadd.f32 %v1186, %v1658
    %v1663 = vxor.u32 %v1661, 2147483648
    %v1664 = vxor.u32 %v1662, 2147483648
    %v1665 = vmul.f32 %v1663, 1.442695
    %v1666 = vpow.pop %v1665
    %v1667 = vmul.f32 %v1664, 1.442695
    %v1668 = vpow.pop %v1667
    %v1669 = vadd.f32 %v1666, 1.0
    %v1670 = vadd.f32 %v1668, 1.0
    %v1671 = vrcp.pop %v1669
    %v1672 = vmul.f32 %v1669, %v1671
    %v1673 = vsub.f32 1.0, %v1672
    %v1674 = vmul.f32 %v1671, %v1673
    %v1675 = vadd.f32 %v1671, %v1674
    %vm1676 = vweird.f32 %v1669
    %vm1677 = vweird.f32 %v1671
    %vm1678 = vmor %vm1676, %vm1677
    %v1679 = vsel %vm1678, %v1671, %v1675
    %v1680 = vand.u32 2147483647, %v1669
    %vm1681 = vcmp.eq.f32.partialorder %v1680, 8.507059e+37
    %v1682 = vand.u32 %v1669, 2147483648
    %v1683 = vor.u32 1.1754944e-38, %v1682
    %v1684 = vsel %vm1681, %v1683, %v1679
    %v1685 = vmul.f32 1.0, %v1684
    %v1686 = vrcp.pop %v1670
    %v1687 = vmul.f32 %v1670, %v1686
    %v1688 = vsub.f32 1.0, %v1687
    %v1689 = vmul.f32 %v1686, %v1688
    %v1690 = vadd.f32 %v1686, %v1689
    %vm1691 = vweird.f32 %v1670
    %vm1692 = vweird.f32 %v1686
    %vm1693 = vmor %vm1691, %vm1692
    %v1694 = vsel %vm1693, %v1686, %v1690
    %v1695 = vand.u32 2147483647, %v1670
    %vm1696 = vcmp.eq.f32.partialorder %v1695, 8.507059e+37
    %v1697 = vand.u32 %v1670, 2147483648
    %v1698 = vor.u32 1.1754944e-38, %v1697
    %v1699 = vsel %vm1696, %v1698, %v1694
    %v1700 = vmul.f32 1.0, %v1699
    %v1701 = vtanh.pop %v1662
    %v1703 = vrot.slane %v1607, 2
    %v1705 = vmul.f32 %v1685, %v1703
    %v1706 = vmul.f32 %v1685, %v1701
    %1708 = vrot.lane.b32.xlu0 %v1706, 64
    %v1709 = vpop.permute.xlu0 %1708
    %v1711 = vadd.f32 %v1705, %v1709
    %v1712 = vtanh.pop %v1711
    %v1713 = vmul.f32 %v1700, %v1712
    %v1715 = vrot.slane %v1713, 6
    %1716 = vrot.lane.b32.xlu0 %v1715, 64
    %v1717 = vpop.permute.xlu0 %1716
    %v1718 = vsel %vm341, %v1717, 0
    %1720 = vmatpush.msra.mxu0 0.0
    %1721 = vmatpush.msra.mxu0 0.0
    %1722 = vmatpush.msra.mxu0 0.0
    %1723 = vmatpush.msra.mxu0 0.0
    %1724 = vmatpush.msra.mxu0 0.0
    %1725 = vmatpush.msra.mxu0 0.0
    %1726 = vmatpush.msra.mxu0 0.0
    %1727 = vmatpush.msra.mxu0 0.0
    %1728 = vmatpush.msra.mxu0 %v1297
    %1729 = vmatpush.msra.mxu0 %v1295
    %1730 = vmatpush.msra.mxu0 %v1293
    %1731 = vmatpush.msra.mxu0 %v1291
    %1732 = vmatpush.msra.mxu0 %v1289
    %1733 = vmatpush.msra.mxu0 %v1287
    %1734 = vmatpush.msra.mxu0 %v1285
    %1735 = vmatpush.msra.mxu0 %v1283
    %1736 = vmatmul.f32.gmra.mxu0 %v1718
    %v1737 = vpop.f32.mrf.mxu0
    %v1738 = vadd.f32 0.0, %v1737
    %1739 = vdwg.mxu0
    %1740 = vmatpush.msra.mxu0 0.0
    %1741 = vmatpush.msra.mxu0 0.0
    %1742 = vmatpush.msra.mxu0 0.0
    %1743 = vmatpush.msra.mxu0 0.0
    %1744 = vmatpush.msra.mxu0 0.0
    %1745 = vmatpush.msra.mxu0 0.0
    %1746 = vmatpush.msra.mxu0 0.0
    %1747 = vmatpush.msra.mxu0 0.0
    %1748 = vmatpush.msra.mxu0 %v1298
    %1749 = vmatpush.msra.mxu0 %v1296
    %1750 = vmatpush.msra.mxu0 %v1294
    %1751 = vmatpush.msra.mxu0 %v1292
    %1752 = vmatpush.msra.mxu0 %v1290
    %1753 = vmatpush.msra.mxu0 %v1288
    %1754 = vmatpush.msra.mxu0 %v1286
    %1755 = vmatpush.msra.mxu0 %v1284
    %1756 = vmatmul.f32.gmra.mxu0 %v1718
    %v1757 = vpop.f32.mrf.mxu0
    %v1758 = vadd.f32 0.0, %v1757
    %1759 = vdwg.mxu0
    %v1762 = vrot.slane %v1738, 4
    %v1763 = vrot.slane %v1758, 4
    %v1766 = vadd.f32 %v1163, %v1762
    %v1767 = vadd.f32 %v1186, %v1763
    %v1768 = vxor.u32 %v1766, 2147483648
    %v1769 = vxor.u32 %v1767, 2147483648
    %v1770 = vmul.f32 %v1768, 1.442695
    %v1771 = vpow.pop %v1770
    %v1772 = vmul.f32 %v1769, 1.442695
    %v1773 = vpow.pop %v1772
    %v1774 = vadd.f32 %v1771, 1.0
    %v1775 = vadd.f32 %v1773, 1.0
    %v1776 = vrcp.pop %v1774
    %v1777 = vmul.f32 %v1774, %v1776
    %v1778 = vsub.f32 1.0, %v1777
    %v1779 = vmul.f32 %v1776, %v1778
    %v1780 = vadd.f32 %v1776, %v1779
    %vm1781 = vweird.f32 %v1774
    %vm1782 = vweird.f32 %v1776
    %vm1783 = vmor %vm1781, %vm1782
    %v1784 = vsel %vm1783, %v1776, %v1780
    %v1785 = vand.u32 2147483647, %v1774
    %vm1786 = vcmp.eq.f32.partialorder %v1785, 8.507059e+37
    %v1787 = vand.u32 %v1774, 2147483648
    %v1788 = vor.u32 1.1754944e-38, %v1787
    %v1789 = vsel %vm1786, %v1788, %v1784
    %v1790 = vmul.f32 1.0, %v1789
    %v1791 = vrcp.pop %v1775
    %v1792 = vmul.f32 %v1775, %v1791
    %v1793 = vsub.f32 1.0, %v1792
    %v1794 = vmul.f32 %v1791, %v1793
    %v1795 = vadd.f32 %v1791, %v1794
    %vm1796 = vweird.f32 %v1775
    %vm1797 = vweird.f32 %v1791
    %vm1798 = vmor %vm1796, %vm1797
    %v1799 = vsel %vm1798, %v1791, %v1795
    %v1800 = vand.u32 2147483647, %v1775
    %vm1801 = vcmp.eq.f32.partialorder %v1800, 8.507059e+37
    %v1802 = vand.u32 %v1775, 2147483648
    %v1803 = vor.u32 1.1754944e-38, %v1802
    %v1804 = vsel %vm1801, %v1803, %v1799
    %v1805 = vmul.f32 1.0, %v1804
    %v1806 = vtanh.pop %v1767
    %v1808 = vrot.slane %v1711, 2
    %v1810 = vmul.f32 %v1790, %v1808
    %v1811 = vmul.f32 %v1790, %v1806
    %1813 = vrot.lane.b32.xlu0 %v1811, 64
    %v1814 = vpop.permute.xlu0 %1813
    %v1816 = vadd.f32 %v1810, %v1814
    %v1817 = vtanh.pop %v1816
    %v1818 = vmul.f32 %v1805, %v1817
    %v1820 = vrot.slane %v1818, 4
    %1821 = vrot.lane.b32.xlu0 %v1820, 64
    %v1822 = vpop.permute.xlu0 %1821
    %v1823 = vsel %vm341, %v1822, 0
    %1825 = vmatpush.msra.mxu0 0.0
    %1826 = vmatpush.msra.mxu0 0.0
    %1827 = vmatpush.msra.mxu0 0.0
    %1828 = vmatpush.msra.mxu0 0.0
    %1829 = vmatpush.msra.mxu0 0.0
    %1830 = vmatpush.msra.mxu0 0.0
    %1831 = vmatpush.msra.mxu0 0.0
    %1832 = vmatpush.msra.mxu0 0.0
    %1833 = vmatpush.msra.mxu0 %v1297
    %1834 = vmatpush.msra.mxu0 %v1295
    %1835 = vmatpush.msra.mxu0 %v1293
    %1836 = vmatpush.msra.mxu0 %v1291
    %1837 = vmatpush.msra.mxu0 %v1289
    %1838 = vmatpush.msra.mxu0 %v1287
    %1839 = vmatpush.msra.mxu0 %v1285
    %1840 = vmatpush.msra.mxu0 %v1283
    %1841 = vmatmul.f32.gmra.mxu0 %v1823
    %v1842 = vpop.f32.mrf.mxu0
    %v1843 = vadd.f32 0.0, %v1842
    %1844 = vdwg.mxu0
    %1845 = vmatpush.msra.mxu0 0.0
    %1846 = vmatpush.msra.mxu0 0.0
    %1847 = vmatpush.msra.mxu0 0.0
    %1848 = vmatpush.msra.mxu0 0.0
    %1849 = vmatpush.msra.mxu0 0.0
    %1850 = vmatpush.msra.mxu0 0.0
    %1851 = vmatpush.msra.mxu0 0.0
    %1852 = vmatpush.msra.mxu0 0.0
    %1853 = vmatpush.msra.mxu0 %v1298
    %1854 = vmatpush.msra.mxu0 %v1296
    %1855 = vmatpush.msra.mxu0 %v1294
    %1856 = vmatpush.msra.mxu0 %v1292
    %1857 = vmatpush.msra.mxu0 %v1290
    %1858 = vmatpush.msra.mxu0 %v1288
    %1859 = vmatpush.msra.mxu0 %v1286
    %1860 = vmatpush.msra.mxu0 %v1284
    %1861 = vmatmul.f32.gmra.mxu0 %v1823
    %v1862 = vpop.f32.mrf.mxu0
    %v1863 = vadd.f32 0.0, %v1862
    %1864 = vdwg.mxu0
    %v1867 = vrot.slane %v1843, 6
    %v1868 = vrot.slane %v1863, 6
    %v1871 = vadd.f32 %v1163, %v1867
    %v1872 = vadd.f32 %v1186, %v1868
    %v1873 = vxor.u32 %v1871, 2147483648
    %v1874 = vxor.u32 %v1872, 2147483648
    %v1875 = vmul.f32 %v1873, 1.442695
    %v1876 = vpow.pop %v1875
    %v1877 = vmul.f32 %v1874, 1.442695
    %v1878 = vpow.pop %v1877
    %v1879 = vadd.f32 %v1876, 1.0
    %v1880 = vadd.f32 %v1878, 1.0
    %v1881 = vrcp.pop %v1879
    %v1882 = vmul.f32 %v1879, %v1881
    %v1883 = vsub.f32 1.0, %v1882
    %v1884 = vmul.f32 %v1881, %v1883
    %v1885 = vadd.f32 %v1881, %v1884
    %vm1886 = vweird.f32 %v1879
    %vm1887 = vweird.f32 %v1881
    %vm1888 = vmor %vm1886, %vm1887
    %v1889 = vsel %vm1888, %v1881, %v1885
    %v1890 = vand.u32 2147483647, %v1879
    %vm1891 = vcmp.eq.f32.partialorder %v1890, 8.507059e+37
    %v1892 = vand.u32 %v1879, 2147483648
    %v1893 = vor.u32 1.1754944e-38, %v1892
    %v1894 = vsel %vm1891, %v1893, %v1889
    %v1895 = vmul.f32 1.0, %v1894
    %v1896 = vrcp.pop %v1880
    %v1897 = vmul.f32 %v1880, %v1896
    %v1898 = vsub.f32 1.0, %v1897
    %v1899 = vmul.f32 %v1896, %v1898
    %v1900 = vadd.f32 %v1896, %v1899
    %vm1901 = vweird.f32 %v1880
    %vm1902 = vweird.f32 %v1896
    %vm1903 = vmor %vm1901, %vm1902
    %v1904 = vsel %vm1903, %v1896, %v1900
    %v1905 = vand.u32 2147483647, %v1880
    %vm1906 = vcmp.eq.f32.partialorder %v1905, 8.507059e+37
    %v1907 = vand.u32 %v1880, 2147483648
    %v1908 = vor.u32 1.1754944e-38, %v1907
    %v1909 = vsel %vm1906, %v1908, %v1904
    %v1910 = vmul.f32 1.0, %v1909
    %v1911 = vtanh.pop %v1872
    %v1913 = vrot.slane %v1816, 2
    %v1915 = vmul.f32 %v1895, %v1913
    %v1916 = vmul.f32 %v1895, %v1911
    %1918 = vrot.lane.b32.xlu0 %v1916, 64
    %v1919 = vpop.permute.xlu0 %1918
    %v1921 = vadd.f32 %v1915, %v1919
    %v1922 = vtanh.pop %v1921
    %v1923 = vmul.f32 %v1910, %v1922
    %v1925 = vrot.slane %v1923, 2
    %1926 = vrot.lane.b32.xlu0 %v1925, 64
    %v1927 = vpop.permute.xlu0 %1926
    %v1928 = vsel %vm341, %v1927, 0
    %1930 = vmatpush.msra.mxu0 0.0
    %1931 = vmatpush.msra.mxu0 0.0
    %1932 = vmatpush.msra.mxu0 0.0
    %1933 = vmatpush.msra.mxu0 0.0
    %1934 = vmatpush.msra.mxu0 0.0
    %1935 = vmatpush.msra.mxu0 0.0
    %1936 = vmatpush.msra.mxu0 0.0
    %1937 = vmatpush.msra.mxu0 0.0
    %1938 = vmatpush.msra.mxu0 %v1297
    %1939 = vmatpush.msra.mxu0 %v1295
    %1940 = vmatpush.msra.mxu0 %v1293
    %1941 = vmatpush.msra.mxu0 %v1291
    %1942 = vmatpush.msra.mxu0 %v1289
    %1943 = vmatpush.msra.mxu0 %v1287
    %1944 = vmatpush.msra.mxu0 %v1285
    %1945 = vmatpush.msra.mxu0 %v1283
    %1946 = vmatmul.f32.gmra.mxu0 %v1928
    %v1947 = vpop.f32.mrf.mxu0
    %v1948 = vadd.f32 0.0, %v1947
    %1949 = vdwg.mxu0
    %1950 = vmatpush.msra.mxu0 0.0
    %1951 = vmatpush.msra.mxu0 0.0
    %1952 = vmatpush.msra.mxu0 0.0
    %1953 = vmatpush.msra.mxu0 0.0
    %1954 = vmatpush.msra.mxu0 0.0
    %1955 = vmatpush.msra.mxu0 0.0
    %1956 = vmatpush.msra.mxu0 0.0
    %1957 = vmatpush.msra.mxu0 0.0
    %1958 = vmatpush.msra.mxu0 %v1298
    %1959 = vmatpush.msra.mxu0 %v1296
    %1960 = vmatpush.msra.mxu0 %v1294
    %1961 = vmatpush.msra.mxu0 %v1292
    %1962 = vmatpush.msra.mxu0 %v1290
    %1963 = vmatpush.msra.mxu0 %v1288
    %1964 = vmatpush.msra.mxu0 %v1286
    %1965 = vmatpush.msra.mxu0 %v1284
    %1966 = vmatmul.f32.gmra.mxu0 %v1928
    %v1967 = vpop.f32.mrf.mxu0
    %v1968 = vadd.f32 0.0, %v1967
    %1969 = vdwg.mxu0
    %v1970 = vadd.f32 %v1163, %v1948
    %v1971 = vadd.f32 %v1186, %v1968
    %v1972 = vxor.u32 %v1970, 2147483648
    %v1973 = vxor.u32 %v1971, 2147483648
    %v1974 = vmul.f32 %v1972, 1.442695
    %v1975 = vpow.pop %v1974
    %v1976 = vmul.f32 %v1973, 1.442695
    %v1977 = vpow.pop %v1976
    %v1978 = vadd.f32 %v1975, 1.0
    %v1979 = vadd.f32 %v1977, 1.0
    %v1980 = vrcp.pop %v1978
    %v1981 = vmul.f32 %v1978, %v1980
    %v1982 = vsub.f32 1.0, %v1981
    %v1983 = vmul.f32 %v1980, %v1982
    %v1984 = vadd.f32 %v1980, %v1983
    %vm1985 = vweird.f32 %v1978
    %vm1986 = vweird.f32 %v1980
    %vm1987 = vmor %vm1985, %vm1986
    %v1988 = vsel %vm1987, %v1980, %v1984
    %v1989 = vand.u32 2147483647, %v1978
    %vm1990 = vcmp.eq.f32.partialorder %v1989, 8.507059e+37
    %v1991 = vand.u32 %v1978, 2147483648
    %v1992 = vor.u32 1.1754944e-38, %v1991
    %v1993 = vsel %vm1990, %v1992, %v1988
    %v1994 = vmul.f32 1.0, %v1993
    %v1995 = vrcp.pop %v1979
    %v1996 = vmul.f32 %v1979, %v1995
    %v1997 = vsub.f32 1.0, %v1996
    %v1998 = vmul.f32 %v1995, %v1997
    %v1999 = vadd.f32 %v1995, %v1998
    %vm2000 = vweird.f32 %v1979
    %vm2001 = vweird.f32 %v1995
    %vm2002 = vmor %vm2000, %vm2001
    %v2003 = vsel %vm2002, %v1995, %v1999
    %v2004 = vand.u32 2147483647, %v1979
    %vm2005 = vcmp.eq.f32.partialorder %v2004, 8.507059e+37
    %v2006 = vand.u32 %v1979, 2147483648
    %v2007 = vor.u32 1.1754944e-38, %v2006
    %v2008 = vsel %vm2005, %v2007, %v2003
    %v2009 = vmul.f32 1.0, %v2008
    %v2010 = vtanh.pop %v1971
    %v2012 = vrot.slane %v1921, 2
    %v2014 = vmul.f32 %v1994, %v2012
    %v2015 = vmul.f32 %v1994, %v2010
    %2017 = vrot.lane.b32.xlu0 %v2015, 64
    %v2018 = vpop.permute.xlu0 %2017
    %v2020 = vadd.f32 %v2014, %v2018
    %v2021 = vtanh.pop %v2020
    %v2022 = vmul.f32 %v2009, %v2021
    %2024 = vrot.lane.b32.xlu0 %v1236, 64
    %v2025 = vpop.permute.xlu0 %2024
    %v2027 = vsel %vm341, %v2025, %v2022
    %v2028 = vld [vmem:[%s8] sm:$0xff]
    %v2029 = vld [vmem:[%s8 + $0x8] sm:$0xff]
    %v2030 = vld [vmem:[%s8 + $0x10] sm:$0xff]
    %v2031 = vld [vmem:[%s8 + $0x18] sm:$0xff]
    %v2032 = vld [vmem:[%s8 + $0x20] sm:$0xff]
    %v2033 = vld [vmem:[%s8 + $0x28] sm:$0xff]
    %v2034 = vld [vmem:[%s8 + $0x30] sm:$0xff]
    %v2035 = vld [vmem:[%s8 + $0x38] sm:$0xff]
    %v2036 = vld [vmem:[%s8 + $0x40] sm:$0xff]
    %v2037 = vld [vmem:[%s8 + $0x48] sm:$0xff]
    %v2038 = vld [vmem:[%s8 + $0x50] sm:$0xff]
    %v2039 = vld [vmem:[%s8 + $0x58] sm:$0xff]
    %v2040 = vld [vmem:[%s8 + $0x60] sm:$0xff]
    %v2041 = vld [vmem:[%s8 + $0x68] sm:$0xff]
    %v2042 = vld [vmem:[%s8 + $0x70] sm:$0xff]
    %v2043 = vld [vmem:[%s8 + $0x78] sm:$0xff]
    %v2044 = vld [vmem:[%s9] sm:$0x1]
    %v2046 = vperm.slane %v2044, 0
    %2048 = vmatpush.msra.mxu0 %v2043
    %2049 = vmatpush.msra.mxu0 %v2042
    %2050 = vmatpush.msra.mxu0 %v2041
    %2051 = vmatpush.msra.mxu0 %v2040
    %2052 = vmatpush.msra.mxu0 %v2039
    %2053 = vmatpush.msra.mxu0 %v2038
    %2054 = vmatpush.msra.mxu0 %v2037
    %2055 = vmatpush.msra.mxu0 %v2036
    %2056 = vmatpush.msra.mxu0 %v2035
    %2057 = vmatpush.msra.mxu0 %v2034
    %2058 = vmatpush.msra.mxu0 %v2033
    %2059 = vmatpush.msra.mxu0 %v2032
    %2060 = vmatpush.msra.mxu0 %v2031
    %2061 = vmatpush.msra.mxu0 %v2030
    %2062 = vmatpush.msra.mxu0 %v2029
    %2063 = vmatpush.msra.mxu0 %v2028
    %2064 = vmatmul.f32.gmra.mxu0 %v1066
    %v2065 = vpop.f32.mrf.mxu0
    %v2066 = vadd.f32 %v2046, %v2065
    %2067 = vdwg.mxu0
    %v2068 = vtanh.pop %v2066
    %v2069 = vld [vmem:[%s10] sm:$0xff]
    %v2070 = vld [vmem:[%s10 + $0x8] sm:$0xff]
    %v2071 = vld [vmem:[%s10 + $0x10] sm:$0xff]
    %v2072 = vld [vmem:[%s10 + $0x18] sm:$0xff]
    %v2073 = vld [vmem:[%s10 + $0x20] sm:$0xff]
    %v2074 = vld [vmem:[%s10 + $0x28] sm:$0xff]
    %v2075 = vld [vmem:[%s10 + $0x30] sm:$0xff]
    %v2076 = vld [vmem:[%s10 + $0x38] sm:$0xff]
    %v2077 = vld [vmem:[%s10 + $0x40] sm:$0xff]
    %v2078 = vld [vmem:[%s10 + $0x48] sm:$0xff]
    %v2079 = vld [vmem:[%s10 + $0x50] sm:$0xff]
    %v2080 = vld [vmem:[%s10 + $0x58] sm:$0xff]
    %v2081 = vld [vmem:[%s10 + $0x60] sm:$0xff]
    %v2082 = vld [vmem:[%s10 + $0x68] sm:$0xff]
    %v2083 = vld [vmem:[%s10 + $0x70] sm:$0xff]
    %v2084 = vld [vmem:[%s10 + $0x78] sm:$0xff]
    %v2085 = vld [vmem:[%s11] sm:$0x1]
    %v2087 = vperm.slane %v2085, 0
    %2089 = vmatpush.msra.mxu0 %v2084
    %2090 = vmatpush.msra.mxu0 %v2083
    %2091 = vmatpush.msra.mxu0 %v2082
    %2092 = vmatpush.msra.mxu0 %v2081
    %2093 = vmatpush.msra.mxu0 %v2080
    %2094 = vmatpush.msra.mxu0 %v2079
    %2095 = vmatpush.msra.mxu0 %v2078
    %2096 = vmatpush.msra.mxu0 %v2077
    %2097 = vmatpush.msra.mxu0 %v2076
    %2098 = vmatpush.msra.mxu0 %v2075
    %2099 = vmatpush.msra.mxu0 %v2074
    %2100 = vmatpush.msra.mxu0 %v2073
    %2101 = vmatpush.msra.mxu0 %v2072
    %2102 = vmatpush.msra.mxu0 %v2071
    %2103 = vmatpush.msra.mxu0 %v2070
    %2104 = vmatpush.msra.mxu0 %v2069
    %2105 = vmatmul.f32.gmra.mxu0 %v2027
    %v2106 = vpop.f32.mrf.mxu0
    %v2107 = vadd.f32 %v2087, %v2106
    %2108 = vdwg.mxu0
    %v2109 = vtanh.pop %v2107
    %v2110 = vmul.f32 %v2068, %v2068
    %vm2111 = vcmask 517120
    %v2112 = vsel %vm2111, %v2110, 0.0
    %2113 = vadd.xlane.f32.xlu0 %v2112
    %v2114 = vpop.xlane.xlu0 %2113
    %v2115 = vrsqrt.pop %v2114
    %v2116 = vmul.f32 %v2115, %v2114
    %v2117 = vmul.f32 %v2116, %v2115
    %v2118 = vmul.f32 0.5, %v2117
    %v2119 = vsub.f32 1.5, %v2118
    %v2120 = vmul.f32 %v2115, %v2119
    %v2121 = vmul.f32 %v2114, %v2120
    %vm2122 = vcmp.eq.f32.partialorder %v2114, inf
    %v2123 = vsel %vm2122, %v2114, %v2121
    %vm2124 = vcmp.eq.f32.partialorder %v2114, 0.0
    %v2125 = vand.u32 %v2114, 2147483648
    %v2126 = vsel %vm2124, %v2125, %v2123
    %v2127 = vmul.f32 %v2109, %v2109
    %v2128 = vsel %vm2111, %v2127, 0.0
    %2129 = vadd.xlane.f32.xlu0 %v2128
    %v2130 = vpop.xlane.xlu0 %2129
    %v2131 = vrsqrt.pop %v2130
    %v2132 = vmul.f32 %v2131, %v2130
    %v2133 = vmul.f32 %v2132, %v2131
    %v2134 = vmul.f32 0.5, %v2133
    %v2135 = vsub.f32 1.5, %v2134
    %v2136 = vmul.f32 %v2131, %v2135
    %v2137 = vmul.f32 %v2130, %v2136
    %vm2138 = vcmp.eq.f32.partialorder %v2130, inf
    %v2139 = vsel %vm2138, %v2130, %v2137
    %vm2140 = vcmp.eq.f32.partialorder %v2130, 0.0
    %v2141 = vand.u32 %v2130, 2147483648
    %v2142 = vsel %vm2140, %v2141, %v2139
    %v2143 = vmax.f32 %v2126, 1e-12
    %v2144 = vrcp.pop %v2143
    %v2145 = vmul.f32 %v2143, %v2144
    %v2146 = vsub.f32 1.0, %v2145
    %v2147 = vmul.f32 %v2144, %v2146
    %v2148 = vadd.f32 %v2144, %v2147
    %vm2149 = vweird.f32 %v2143
    %vm2150 = vweird.f32 %v2144
    %vm2151 = vmor %vm2149, %vm2150
    %v2152 = vsel %vm2151, %v2144, %v2148
    %v2153 = vand.u32 2147483647, %v2143
    %vm2154 = vcmp.eq.f32.partialorder %v2153, 8.507059e+37
    %v2155 = vand.u32 %v2143, 2147483648
    %v2156 = vor.u32 1.1754944e-38, %v2155
    %v2157 = vsel %vm2154, %v2156, %v2152
    %v2158 = vmul.f32 %v2068, %v2157
    %v2159 = vmax.f32 %v2142, 1e-12
    %v2160 = vrcp.pop %v2159
    %v2161 = vmul.f32 %v2159, %v2160
    %v2162 = vsub.f32 1.0, %v2161
    %v2163 = vmul.f32 %v2160, %v2162
    %v2164 = vadd.f32 %v2160, %v2163
    %vm2165 = vweird.f32 %v2159
    %vm2166 = vweird.f32 %v2160
    %vm2167 = vmor %vm2165, %vm2166
    %v2168 = vsel %vm2167, %v2160, %v2164
    %v2169 = vand.u32 2147483647, %v2159
    %vm2170 = vcmp.eq.f32.partialorder %v2169, 8.507059e+37
    %v2171 = vand.u32 %v2159, 2147483648
    %v2172 = vor.u32 1.1754944e-38, %v2171
    %v2173 = vsel %vm2170, %v2172, %v2168
    %v2174 = vmul.f32 %v2109, %v2173
    %v2175 = vmul.f32 %v2158, %v2174
    %v2176 = vsel %vm2111, %v2175, 0.0
    %2177 = vadd.xlane.f32.xlu0 %v2176
    %v2178 = vpop.xlane.xlu0 %2177
    %vm2179 = vcmask 1024
    %2180 = vst.msk [vmem:[%s12] sm:$0x3] %vm2179, %v2178
    // Predicated region
    $region66: #{lstm_dssm_forward.1} parent=1 // pred_check
      _
    $region67: #{lstm_dssm_forward.1} parent=1 // pred_check_branch
      %2182 = sbr.rel (0) target = $region69
    $region68: #{lstm_dssm_forward.1} parent=1 // pred_region
      _
    $region69: #{lstm_dssm_forward.1} parent=1 // pred_fallthru
      _
    // Predicated region
    $region70: #{lstm_dssm_forward.1} parent=1 // pred_check
      _
    $region71: #{lstm_dssm_forward.1} parent=1 // pred_check_branch
      %2184 = sbr.rel (0) target = $region73
    $region72: #{lstm_dssm_forward.1} parent=1 // pred_region
      _
    $region73: #{lstm_dssm_forward.1} parent=1 // pred_fallthru
      _
    %2185 = vsyncpa [#allocation3], 1
    %2186 = vsyncpa [#allocation5], 1
    %2187 = vsyncpa [#allocation8], 1

</llo_original>
